<compile_context>
chip_gen: v7x
topology: tpu7x:2x2x1
jax: 0.10.0
libtpu: 0.0.40
codegen_flags: <defaults>
</compile_context>

<pallas_src>
import jax
import jax.numpy as jnp
import numpy as np
from jax import lax
from jax.experimental import pallas as pl
from jax.experimental.pallas import tpu as pltpu


def _etesvs_head_kernel(x_ref, m_ref, w_in_ref, b_in_ref, sl_ref, sr_ref,
                        wd3_ref, bd_ref, w1_ref, b1_ref, w_out_ref, b_out_ref,
                        o_ref):
    """One grid step == one batch sample, native channels-on-sublanes /
    time-on-lanes layout.

      x_ref     : (C_in, T)  f32           sample features (NCT block)
      m_ref     : (1, T)     f32           subsampled mask row
      w_in_ref  : (F, C_in)                conv_1x1_in weight (pre-cast)
      sl/sr_ref : (L, T, T)                0/1 shift matrices for x[t -/+ d]
      wd3_ref   : (L, F, 3F)               fused 3-tap dilated-conv weights
      w1_ref    : (L, F, F)                per-layer 1x1 conv weights
      w_out_ref : (C, F)                   output head weight
      biases    : (*, F|C, 1) f32
      o_ref     : (C, T)     f32           logits * mask (PyTorch NCT layout)
    """
    num_layers = wd3_ref.shape[0]
    F = w_in_ref.shape[0]
    T = x_ref.shape[1]
    dot_dtype = w_in_ref.dtype            # bf16 (perf) or f32 (validation)

    mask = m_ref[...]                                  # (1, T) f32
    mask_f = jnp.broadcast_to(mask, (F, T))            # hoisted (no CSE in loop)

    # conv_1x1_in: (F, C_in) @ (C_in, T) -> (F, T), f32 accumulation.
    x = x_ref[...].astype(dot_dtype)
    h = jnp.dot(w_in_ref[...], x,
                preferred_element_type=jnp.float32) + b_in_ref[...]

    # Dilated residual layers (static unroll; dilation d = 2**i is static).
    for li in range(num_layers):
        h16 = h.astype(dot_dtype)                      # (F, T)
        # Exact temporal shifts via 0/1 matrices (zero padding built in; MXU
        # has plenty of slack at these sizes, and this avoids any unaligned
        # lane shuffles / boundary masks).
        h_l = jnp.dot(h16, sl_ref[li],
                      preferred_element_type=jnp.float32).astype(dot_dtype)
        h_r = jnp.dot(h16, sr_ref[li],
                      preferred_element_type=jnp.float32).astype(dot_dtype)
        # Fused 3-tap contraction: (F, 3F) @ (3F, T); sublane-aligned concat.
        hh = jnp.concatenate([h_l, h16, h_r], axis=0)  # (3F, T)
        acc = jax.nn.relu(
            jnp.dot(wd3_ref[li], hh,
                    preferred_element_type=jnp.float32) + bd_ref[li])
        out = jnp.dot(w1_ref[li], acc.astype(dot_dtype),
                      preferred_element_type=jnp.float32) + b1_ref[li]
        # Dropout is identity at inference time.
        h = (h + out) * mask_f

    logits = jnp.dot(w_out_ref[...], h.astype(dot_dtype),
                     preferred_element_type=jnp.float32) + b_out_ref[...]
    o_ref[...] = logits * mask


def etesvs_head_forward(seg_feature, masks, kparams, *, sample_rate):
    """seg_feature: (N, C_in, T) f32 (native PyTorch NCT); masks: (N, 1, T*sr).

    Returns seg_score with PyTorch shape (1, N, num_classes, T*sample_rate)."""
    N, C_in, T = seg_feature.shape
    num_classes = kparams["w_out"].shape[0]

    mask_s = masks[:, 0:1, ::sample_rate]              # (N, 1, T)

    def const_spec(a):
        z = (0,) * a.ndim
        return pl.BlockSpec(a.shape, lambda b, _z=z: _z)

    weights = (kparams["w_in"], kparams["b_in"], kparams["sl"], kparams["sr"],
               kparams["wd3"], kparams["bd"], kparams["w1"], kparams["b1"],
               kparams["w_out"], kparams["b_out"])

    out = pl.pallas_call(
        _etesvs_head_kernel,
        out_shape=jax.ShapeDtypeStruct((N, num_classes, T), jnp.float32),
        grid=(N,),
        in_specs=[pl.BlockSpec((None, C_in, T), lambda b: (b, 0, 0)),
                  pl.BlockSpec((None, 1, T), lambda b: (b, 0, 0))]
                 + [const_spec(w) for w in weights],
        out_specs=pl.BlockSpec((None, num_classes, T), lambda b: (b, 0, 0)),
        compiler_params=pltpu.CompilerParams(
            dimension_semantics=("parallel",),        # 2x on v7x (2 TCs)
            vmem_limit_bytes=32 * 1024 * 1024),       # safe under v7x's 64 MiB
    )(seg_feature, mask_s, *weights)

    # out is already (N, num_classes, T) in PyTorch NCT layout: nearest
    # upsample the small pre-repeat tensor, no transpose needed at all.
    seg_score = jnp.repeat(out, sample_rate, axis=-1)[None]   # (1, N, C, T*sr)
    return seg_score


# ---------------------------------------------------------------------------
# Parameter preparation
# ---------------------------------------------------------------------------
def make_params(key, *, num_classes, num_layers, seg_in_channels, num_f_maps):
    """PyTorch-style parameters (Conv1d weight shape (out, in, k))."""
    ks = jax.random.split(key, 6 + 4 * num_layers)
    it = iter(ks)
    scale = 0.1
    pt = {
        "w_in": scale * jax.random.normal(next(it), (num_f_maps, seg_in_channels, 1), jnp.float32),
        "b_in": scale * jax.random.normal(next(it), (num_f_maps,), jnp.float32),
        "wd": [], "bd": [], "w1": [], "b1": [],
        "w_out": scale * jax.random.normal(next(it), (num_classes, num_f_maps, 1), jnp.float32),
        "b_out": scale * jax.random.normal(next(it), (num_classes,), jnp.float32),
    }
    for _ in range(num_layers):
        pt["wd"].append(scale * jax.random.normal(next(it), (num_f_maps, num_f_maps, 3), jnp.float32))
        pt["bd"].append(scale * jax.random.normal(next(it), (num_f_maps,), jnp.float32))
        pt["w1"].append(scale * jax.random.normal(next(it), (num_f_maps, num_f_maps, 1), jnp.float32))
        pt["b1"].append(scale * jax.random.normal(next(it), (num_f_maps,), jnp.float32))
    return pt


def prep_kernel_params(pt, *, t_len, dot_dtype=jnp.bfloat16):
    """Kernel-layout parameters; matmul weights pre-cast ONCE to dot_dtype.

    Biases stay f32 (added to f32 accumulators).  sl/sr are exact 0/1 temporal
    shift matrices: (h @ sl[i])[:, t] == h[:, t - 2**i] with zero padding, and
    np.eye(T, k=d) is all-zero when d >= T (degenerate dilation handled)."""
    num_layers = len(pt["wd"])
    wcast = lambda a: jnp.asarray(a, dot_dtype)
    sl = np.stack([np.eye(t_len, k=2 ** i, dtype=np.float32) for i in range(num_layers)])
    sr = np.stack([np.eye(t_len, k=-(2 ** i), dtype=np.float32) for i in range(num_layers)])
    kp = {
        "w_in": wcast(pt["w_in"][:, :, 0]),                                    # (F, C_in)
        "b_in": pt["b_in"][:, None],                                           # (F, 1)
        "sl": jnp.asarray(sl, dot_dtype),                                      # (L, T, T)
        "sr": jnp.asarray(sr, dot_dtype),                                      # (L, T, T)
        # Fused 3-tap weight [W_k0 | W_k1 | W_k2] on the input axis so the
        # dilated conv is a single (F, 3F) @ (3F, T) contraction per layer.
        "wd3": wcast(jnp.stack([jnp.concatenate([w[:, :, k] for k in range(3)], axis=1)
                                for w in pt["wd"]])),                          # (L, F, 3F)
        "bd": jnp.stack([b[:, None] for b in pt["bd"]]),                       # (L, F, 1)
        "w1": wcast(jnp.stack([w[:, :, 0] for w in pt["w1"]])),                # (L, F, F)
        "b1": jnp.stack([b[:, None] for b in pt["b1"]]),                       # (L, F, 1)
        "w_out": wcast(pt["w_out"][:, :, 0]),                                  # (C, F)
        "b_out": pt["b_out"][:, None],                                         # (C, 1)
    }
    return kp


# ---------------------------------------------------------------------------
# Pure-JAX reference (PyTorch NCT conventions, lax.conv) for verification.
# ---------------------------------------------------------------------------
def ref_forward(seg_feature, masks, pt_params, *, num_layers, sample_rate):
    mask = masks[:, :, ::sample_rate]

    def conv1d(x, w, b, d=1, pad=0):
        y = lax.conv_general_dilated(
            x, w, window_strides=(1,), padding=[(pad, pad)],
            rhs_dilation=(d,), dimension_numbers=("NCH", "OIH", "NCH"))
        return y + b[None, :, None]

    h = conv1d(seg_feature, pt_params["w_in"], pt_params["b_in"])
    for li in range(num_layers):
        d = 2 ** li
        o = jax.nn.relu(conv1d(h, pt_params["wd"][li], pt_params["bd"][li], d=d, pad=d))
        o = conv1d(o, pt_params["w1"][li], pt_params["b1"][li])
        h = (h + o) * mask[:, 0:1, :]
    out = conv1d(h, pt_params["w_out"], pt_params["b_out"]) * mask[:, 0:1, :]
    outputs = out[None]                                     # (1, N, C, T)
    return jnp.repeat(outputs, sample_rate, axis=-1)        # nearest upsample


if __name__ == "__main__":
    # Small, forward-consistent shapes.
    num_classes = 8
    num_layers = 4
    sample_rate = 4
    sliding_window = 64          # full temporal length of masks
    seg_in_channels = 32
    num_f_maps = 16
    N = 2
    T = sliding_window // sample_rate    # temporal length of seg_feature

    key = jax.random.PRNGKey(0)
    k_feat, k_param = jax.random.split(key)

    seg_feature = jax.random.normal(k_feat, (N, seg_in_channels, T), jnp.float32)
    # mask: sample 0 fully valid, sample 1 partially valid
    masks = jnp.ones((N, 1, sliding_window), jnp.float32)
    masks = masks.at[1, :, 48:].set(0.0)

    pt_params = make_params(k_param, num_classes=num_classes, num_layers=num_layers,
                            seg_in_channels=seg_in_channels, num_f_maps=num_f_maps)

    ref = ref_forward(seg_feature, masks, pt_params,
                      num_layers=num_layers, sample_rate=sample_rate)
    ref = jax.block_until_ready(ref)

    # Exact-semantics check (f32 MXU operands).
    kp_f32 = prep_kernel_params(pt_params, t_len=T, dot_dtype=jnp.float32)
    out_f32 = etesvs_head_forward(seg_feature, masks, kp_f32, sample_rate=sample_rate)
    out_f32 = jax.block_until_ready(out_f32)
    assert out_f32.shape == (1, N, num_classes, sliding_window), out_f32.shape
    np.testing.assert_allclose(np.asarray(out_f32), np.asarray(ref),
                               rtol=1e-4, atol=1e-4)

    # Performance configuration (bf16 MXU operands pre-cast once, f32 accum).
    kp_bf16 = prep_kernel_params(pt_params, t_len=T, dot_dtype=jnp.bfloat16)
    out_bf16 = etesvs_head_forward(seg_feature, masks, kp_bf16, sample_rate=sample_rate)
    out_bf16 = jax.block_until_ready(out_bf16)
    assert out_bf16.shape == (1, N, num_classes, sliding_window), out_bf16.shape
    np.testing.assert_allclose(np.asarray(out_bf16), np.asarray(ref),
                               rtol=5e-2, atol=5e-2)

    print("KERNEL_OK")
</pallas_src>

<mosaic_0001>
module attributes {stable_mosaic.version = 11 : i64} {
  func.func @_etesvs_head_kernel(%arg0: i32, %arg1: memref<1x32x16xf32, #tpu.memory_space<vmem>>, %arg2: memref<1x1x16xf32, #tpu.memory_space<vmem>>, %arg3: memref<16x32xf32, #tpu.memory_space<vmem>>, %arg4: memref<16x1xf32, #tpu.memory_space<vmem>>, %arg5: memref<4x16x16xf32, #tpu.memory_space<vmem>>, %arg6: memref<4x16x16xf32, #tpu.memory_space<vmem>>, %arg7: memref<4x16x48xf32, #tpu.memory_space<vmem>>, %arg8: memref<4x16x1xf32, #tpu.memory_space<vmem>>, %arg9: memref<4x16x16xf32, #tpu.memory_space<vmem>>, %arg10: memref<4x16x1xf32, #tpu.memory_space<vmem>>, %arg11: memref<8x16xf32, #tpu.memory_space<vmem>>, %arg12: memref<8x1xf32, #tpu.memory_space<vmem>>, %arg13: memref<1x8x16xf32, #tpu.memory_space<vmem>>) attributes {dimension_semantics = [#tpu.dimension_semantics<parallel>], iteration_bounds = array<i64: 2>, scalar_prefetch = 0 : i64, scratch_operands = 0 : i64, tpu.core_type = #tpu.core_type<tc>, window_params = [{transform_indices = @transform_0, window_bounds = array<i64: 1, 32, 16>}, {transform_indices = @transform_1, window_bounds = array<i64: 1, 1, 16>}, {pipeline_mode = #tpu.pipeline_mode<synchronous>, transform_indices = @transform_2, window_bounds = array<i64: 16, 32>}, {pipeline_mode = #tpu.pipeline_mode<synchronous>, transform_indices = @transform_3, window_bounds = array<i64: 16, 1>}, {pipeline_mode = #tpu.pipeline_mode<synchronous>, transform_indices = @transform_4, window_bounds = array<i64: 4, 16, 16>}, {pipeline_mode = #tpu.pipeline_mode<synchronous>, transform_indices = @transform_5, window_bounds = array<i64: 4, 16, 16>}, {pipeline_mode = #tpu.pipeline_mode<synchronous>, transform_indices = @transform_6, window_bounds = array<i64: 4, 16, 48>}, {pipeline_mode = #tpu.pipeline_mode<synchronous>, transform_indices = @transform_7, window_bounds = array<i64: 4, 16, 1>}, {pipeline_mode = #tpu.pipeline_mode<synchronous>, transform_indices = @transform_8, window_bounds = array<i64: 4, 16, 16>}, {pipeline_mode = #tpu.pipeline_mode<synchronous>, transform_indices = @transform_9, window_bounds = array<i64: 4, 16, 1>}, {pipeline_mode = #tpu.pipeline_mode<synchronous>, transform_indices = @transform_10, window_bounds = array<i64: 8, 16>}, {pipeline_mode = #tpu.pipeline_mode<synchronous>, transform_indices = @transform_11, window_bounds = array<i64: 8, 1>}, {transform_indices = @transform_12, window_bounds = array<i64: 1, 8, 16>}]} {
    %c0 = arith.constant 0 : index
    %c0_0 = arith.constant 0 : index
    %c0_1 = arith.constant 0 : index
    %0 = vector.load %arg2[%c0, %c0_0, %c0_1] : memref<1x1x16xf32, #tpu.memory_space<vmem>>, vector<1x1x16xf32>
    %1 = vector.shape_cast %0 : vector<1x1x16xf32> to vector<1x16xf32>
    %2 = vector.shape_cast %1 : vector<1x16xf32> to vector<1x16xf32>
    %3 = vector.broadcast %2 : vector<1x16xf32> to vector<16x16xf32>
    %c0_2 = arith.constant 0 : index
    %c0_3 = arith.constant 0 : index
    %c0_4 = arith.constant 0 : index
    %4 = vector.load %arg1[%c0_2, %c0_3, %c0_4] : memref<1x32x16xf32, #tpu.memory_space<vmem>>, vector<1x32x16xf32>
    %5 = vector.shape_cast %4 : vector<1x32x16xf32> to vector<32x16xf32>
    %c0_5 = arith.constant 0 : index
    %c0_6 = arith.constant 0 : index
    %6 = vector.load %arg3[%c0_5, %c0_6] : memref<16x32xf32, #tpu.memory_space<vmem>>, vector<16x32xf32>
    %cst = arith.constant dense<0.000000e+00> : vector<16x16xf32>
    %7 = tpu.matmul %6, %5, %cst {dimension_numbers = #tpu.dot_dimension_numbers<[1], [0], [0], [1], [0, 0, 1, 1], [], []>} : vector<16x32xf32>, vector<32x16xf32>, vector<16x16xf32> -> vector<16x16xf32>
    %c0_7 = arith.constant 0 : index
    %c0_8 = arith.constant 0 : index
    %8 = vector.load %arg4[%c0_7, %c0_8] : memref<16x1xf32, #tpu.memory_space<vmem>>, vector<16x1xf32>
    %9 = vector.broadcast %8 : vector<16x1xf32> to vector<16x16xf32>
    %10 = arith.addf %7, %9 : vector<16x16xf32>
    %c0_9 = arith.constant 0 : index
    %c0_10 = arith.constant 0 : index
    %c0_11 = arith.constant 0 : index
    %11 = vector.load %arg5[%c0_9, %c0_10, %c0_11] : memref<4x16x16xf32, #tpu.memory_space<vmem>>, vector<1x16x16xf32>
    %12 = vector.shape_cast %11 : vector<1x16x16xf32> to vector<16x16xf32>
    %cst_12 = arith.constant dense<0.000000e+00> : vector<16x16xf32>
    %13 = tpu.matmul %10, %12, %cst_12 {dimension_numbers = #tpu.dot_dimension_numbers<[1], [0], [0], [1], [0, 0, 1, 1], [], []>} : vector<16x16xf32>, vector<16x16xf32>, vector<16x16xf32> -> vector<16x16xf32>
    %c0_13 = arith.constant 0 : index
    %c0_14 = arith.constant 0 : index
    %c0_15 = arith.constant 0 : index
    %14 = vector.load %arg6[%c0_13, %c0_14, %c0_15] : memref<4x16x16xf32, #tpu.memory_space<vmem>>, vector<1x16x16xf32>
    %15 = vector.shape_cast %14 : vector<1x16x16xf32> to vector<16x16xf32>
    %cst_16 = arith.constant dense<0.000000e+00> : vector<16x16xf32>
    %16 = tpu.matmul %10, %15, %cst_16 {dimension_numbers = #tpu.dot_dimension_numbers<[1], [0], [0], [1], [0, 0, 1, 1], [], []>} : vector<16x16xf32>, vector<16x16xf32>, vector<16x16xf32> -> vector<16x16xf32>
    %17 = tpu.concatenate %13, %10, %16 in 0 : vector<16x16xf32>, vector<16x16xf32>, vector<16x16xf32> -> vector<48x16xf32>
    %c0_17 = arith.constant 0 : index
    %c0_18 = arith.constant 0 : index
    %c0_19 = arith.constant 0 : index
    %18 = vector.load %arg7[%c0_17, %c0_18, %c0_19] : memref<4x16x48xf32, #tpu.memory_space<vmem>>, vector<1x16x48xf32>
    %19 = vector.shape_cast %18 : vector<1x16x48xf32> to vector<16x48xf32>
    %cst_20 = arith.constant dense<0.000000e+00> : vector<16x16xf32>
    %20 = tpu.matmul %19, %17, %cst_20 {dimension_numbers = #tpu.dot_dimension_numbers<[1], [0], [0], [1], [0, 0, 1, 1], [], []>} : vector<16x48xf32>, vector<48x16xf32>, vector<16x16xf32> -> vector<16x16xf32>
    %c0_21 = arith.constant 0 : index
    %c0_22 = arith.constant 0 : index
    %c0_23 = arith.constant 0 : index
    %21 = vector.load %arg8[%c0_21, %c0_22, %c0_23] : memref<4x16x1xf32, #tpu.memory_space<vmem>>, vector<1x16x1xf32>
    %22 = vector.shape_cast %21 : vector<1x16x1xf32> to vector<16x1xf32>
    %23 = vector.broadcast %22 : vector<16x1xf32> to vector<16x16xf32>
    %24 = arith.addf %20, %23 : vector<16x16xf32>
    %cst_24 = arith.constant 0.000000e+00 : f32
    %25 = vector.broadcast %cst_24 : f32 to vector<16x16xf32>
    %26 = arith.maximumf %24, %25 : vector<16x16xf32>
    %c0_25 = arith.constant 0 : index
    %c0_26 = arith.constant 0 : index
    %c0_27 = arith.constant 0 : index
    %27 = vector.load %arg9[%c0_25, %c0_26, %c0_27] : memref<4x16x16xf32, #tpu.memory_space<vmem>>, vector<1x16x16xf32>
    %28 = vector.shape_cast %27 : vector<1x16x16xf32> to vector<16x16xf32>
    %cst_28 = arith.constant dense<0.000000e+00> : vector<16x16xf32>
    %29 = tpu.matmul %28, %26, %cst_28 {dimension_numbers = #tpu.dot_dimension_numbers<[1], [0], [0], [1], [0, 0, 1, 1], [], []>} : vector<16x16xf32>, vector<16x16xf32>, vector<16x16xf32> -> vector<16x16xf32>
    %c0_29 = arith.constant 0 : index
    %c0_30 = arith.constant 0 : index
    %c0_31 = arith.constant 0 : index
    %30 = vector.load %arg10[%c0_29, %c0_30, %c0_31] : memref<4x16x1xf32, #tpu.memory_space<vmem>>, vector<1x16x1xf32>
    %31 = vector.shape_cast %30 : vector<1x16x1xf32> to vector<16x1xf32>
    %32 = vector.broadcast %31 : vector<16x1xf32> to vector<16x16xf32>
    %33 = arith.addf %29, %32 : vector<16x16xf32>
    %34 = arith.addf %10, %33 : vector<16x16xf32>
    %35 = arith.mulf %34, %3 : vector<16x16xf32>
    %c1 = arith.constant 1 : index
    %c0_32 = arith.constant 0 : index
    %c0_33 = arith.constant 0 : index
    %36 = vector.load %arg5[%c1, %c0_32, %c0_33] : memref<4x16x16xf32, #tpu.memory_space<vmem>>, vector<1x16x16xf32>
    %37 = vector.shape_cast %36 : vector<1x16x16xf32> to vector<16x16xf32>
    %cst_34 = arith.constant dense<0.000000e+00> : vector<16x16xf32>
    %38 = tpu.matmul %35, %37, %cst_34 {dimension_numbers = #tpu.dot_dimension_numbers<[1], [0], [0], [1], [0, 0, 1, 1], [], []>} : vector<16x16xf32>, vector<16x16xf32>, vector<16x16xf32> -> vector<16x16xf32>
    %c1_35 = arith.constant 1 : index
    %c0_36 = arith.constant 0 : index
    %c0_37 = arith.constant 0 : index
    %39 = vector.load %arg6[%c1_35, %c0_36, %c0_37] : memref<4x16x16xf32, #tpu.memory_space<vmem>>, vector<1x16x16xf32>
    %40 = vector.shape_cast %39 : vector<1x16x16xf32> to vector<16x16xf32>
    %cst_38 = arith.constant dense<0.000000e+00> : vector<16x16xf32>
    %41 = tpu.matmul %35, %40, %cst_38 {dimension_numbers = #tpu.dot_dimension_numbers<[1], [0], [0], [1], [0, 0, 1, 1], [], []>} : vector<16x16xf32>, vector<16x16xf32>, vector<16x16xf32> -> vector<16x16xf32>
    %42 = tpu.concatenate %38, %35, %41 in 0 : vector<16x16xf32>, vector<16x16xf32>, vector<16x16xf32> -> vector<48x16xf32>
    %c1_39 = arith.constant 1 : index
    %c0_40 = arith.constant 0 : index
    %c0_41 = arith.constant 0 : index
    %43 = vector.load %arg7[%c1_39, %c0_40, %c0_41] : memref<4x16x48xf32, #tpu.memory_space<vmem>>, vector<1x16x48xf32>
    %44 = vector.shape_cast %43 : vector<1x16x48xf32> to vector<16x48xf32>
    %cst_42 = arith.constant dense<0.000000e+00> : vector<16x16xf32>
    %45 = tpu.matmul %44, %42, %cst_42 {dimension_numbers = #tpu.dot_dimension_numbers<[1], [0], [0], [1], [0, 0, 1, 1], [], []>} : vector<16x48xf32>, vector<48x16xf32>, vector<16x16xf32> -> vector<16x16xf32>
    %c1_43 = arith.constant 1 : index
    %c0_44 = arith.constant 0 : index
    %c0_45 = arith.constant 0 : index
    %46 = vector.load %arg8[%c1_43, %c0_44, %c0_45] : memref<4x16x1xf32, #tpu.memory_space<vmem>>, vector<1x16x1xf32>
    %47 = vector.shape_cast %46 : vector<1x16x1xf32> to vector<16x1xf32>
    %48 = vector.broadcast %47 : vector<16x1xf32> to vector<16x16xf32>
    %49 = arith.addf %45, %48 : vector<16x16xf32>
    %cst_46 = arith.constant 0.000000e+00 : f32
    %50 = vector.broadcast %cst_46 : f32 to vector<16x16xf32>
    %51 = arith.maximumf %49, %50 : vector<16x16xf32>
    %c1_47 = arith.constant 1 : index
    %c0_48 = arith.constant 0 : index
    %c0_49 = arith.constant 0 : index
    %52 = vector.load %arg9[%c1_47, %c0_48, %c0_49] : memref<4x16x16xf32, #tpu.memory_space<vmem>>, vector<1x16x16xf32>
    %53 = vector.shape_cast %52 : vector<1x16x16xf32> to vector<16x16xf32>
    %cst_50 = arith.constant dense<0.000000e+00> : vector<16x16xf32>
    %54 = tpu.matmul %53, %51, %cst_50 {dimension_numbers = #tpu.dot_dimension_numbers<[1], [0], [0], [1], [0, 0, 1, 1], [], []>} : vector<16x16xf32>, vector<16x16xf32>, vector<16x16xf32> -> vector<16x16xf32>
    %c1_51 = arith.constant 1 : index
    %c0_52 = arith.constant 0 : index
    %c0_53 = arith.constant 0 : index
    %55 = vector.load %arg10[%c1_51, %c0_52, %c0_53] : memref<4x16x1xf32, #tpu.memory_space<vmem>>, vector<1x16x1xf32>
    %56 = vector.shape_cast %55 : vector<1x16x1xf32> to vector<16x1xf32>
    %57 = vector.broadcast %56 : vector<16x1xf32> to vector<16x16xf32>
    %58 = arith.addf %54, %57 : vector<16x16xf32>
    %59 = arith.addf %35, %58 : vector<16x16xf32>
    %60 = arith.mulf %59, %3 : vector<16x16xf32>
    %c2 = arith.constant 2 : index
    %c0_54 = arith.constant 0 : index
    %c0_55 = arith.constant 0 : index
    %61 = vector.load %arg5[%c2, %c0_54, %c0_55] : memref<4x16x16xf32, #tpu.memory_space<vmem>>, vector<1x16x16xf32>
    %62 = vector.shape_cast %61 : vector<1x16x16xf32> to vector<16x16xf32>
    %cst_56 = arith.constant dense<0.000000e+00> : vector<16x16xf32>
    %63 = tpu.matmul %60, %62, %cst_56 {dimension_numbers = #tpu.dot_dimension_numbers<[1], [0], [0], [1], [0, 0, 1, 1], [], []>} : vector<16x16xf32>, vector<16x16xf32>, vector<16x16xf32> -> vector<16x16xf32>
    %c2_57 = arith.constant 2 : index
    %c0_58 = arith.constant 0 : index
    %c0_59 = arith.constant 0 : index
    %64 = vector.load %arg6[%c2_57, %c0_58, %c0_59] : memref<4x16x16xf32, #tpu.memory_space<vmem>>, vector<1x16x16xf32>
    %65 = vector.shape_cast %64 : vector<1x16x16xf32> to vector<16x16xf32>
    %cst_60 = arith.constant dense<0.000000e+00> : vector<16x16xf32>
    %66 = tpu.matmul %60, %65, %cst_60 {dimension_numbers = #tpu.dot_dimension_numbers<[1], [0], [0], [1], [0, 0, 1, 1], [], []>} : vector<16x16xf32>, vector<16x16xf32>, vector<16x16xf32> -> vector<16x16xf32>
    %67 = tpu.concatenate %63, %60, %66 in 0 : vector<16x16xf32>, vector<16x16xf32>, vector<16x16xf32> -> vector<48x16xf32>
    %c2_61 = arith.constant 2 : index
    %c0_62 = arith.constant 0 : index
    %c0_63 = arith.constant 0 : index
    %68 = vector.load %arg7[%c2_61, %c0_62, %c0_63] : memref<4x16x48xf32, #tpu.memory_space<vmem>>, vector<1x16x48xf32>
    %69 = vector.shape_cast %68 : vector<1x16x48xf32> to vector<16x48xf32>
    %cst_64 = arith.constant dense<0.000000e+00> : vector<16x16xf32>
    %70 = tpu.matmul %69, %67, %cst_64 {dimension_numbers = #tpu.dot_dimension_numbers<[1], [0], [0], [1], [0, 0, 1, 1], [], []>} : vector<16x48xf32>, vector<48x16xf32>, vector<16x16xf32> -> vector<16x16xf32>
    %c2_65 = arith.constant 2 : index
    %c0_66 = arith.constant 0 : index
    %c0_67 = arith.constant 0 : index
    %71 = vector.load %arg8[%c2_65, %c0_66, %c0_67] : memref<4x16x1xf32, #tpu.memory_space<vmem>>, vector<1x16x1xf32>
    %72 = vector.shape_cast %71 : vector<1x16x1xf32> to vector<16x1xf32>
    %73 = vector.broadcast %72 : vector<16x1xf32> to vector<16x16xf32>
    %74 = arith.addf %70, %73 : vector<16x16xf32>
    %cst_68 = arith.constant 0.000000e+00 : f32
    %75 = vector.broadcast %cst_68 : f32 to vector<16x16xf32>
    %76 = arith.maximumf %74, %75 : vector<16x16xf32>
    %c2_69 = arith.constant 2 : index
    %c0_70 = arith.constant 0 : index
    %c0_71 = arith.constant 0 : index
    %77 = vector.load %arg9[%c2_69, %c0_70, %c0_71] : memref<4x16x16xf32, #tpu.memory_space<vmem>>, vector<1x16x16xf32>
    %78 = vector.shape_cast %77 : vector<1x16x16xf32> to vector<16x16xf32>
    %cst_72 = arith.constant dense<0.000000e+00> : vector<16x16xf32>
    %79 = tpu.matmul %78, %76, %cst_72 {dimension_numbers = #tpu.dot_dimension_numbers<[1], [0], [0], [1], [0, 0, 1, 1], [], []>} : vector<16x16xf32>, vector<16x16xf32>, vector<16x16xf32> -> vector<16x16xf32>
    %c2_73 = arith.constant 2 : index
    %c0_74 = arith.constant 0 : index
    %c0_75 = arith.constant 0 : index
    %80 = vector.load %arg10[%c2_73, %c0_74, %c0_75] : memref<4x16x1xf32, #tpu.memory_space<vmem>>, vector<1x16x1xf32>
    %81 = vector.shape_cast %80 : vector<1x16x1xf32> to vector<16x1xf32>
    %82 = vector.broadcast %81 : vector<16x1xf32> to vector<16x16xf32>
    %83 = arith.addf %79, %82 : vector<16x16xf32>
    %84 = arith.addf %60, %83 : vector<16x16xf32>
    %85 = arith.mulf %84, %3 : vector<16x16xf32>
    %c3 = arith.constant 3 : index
    %c0_76 = arith.constant 0 : index
    %c0_77 = arith.constant 0 : index
    %86 = vector.load %arg5[%c3, %c0_76, %c0_77] : memref<4x16x16xf32, #tpu.memory_space<vmem>>, vector<1x16x16xf32>
    %87 = vector.shape_cast %86 : vector<1x16x16xf32> to vector<16x16xf32>
    %cst_78 = arith.constant dense<0.000000e+00> : vector<16x16xf32>
    %88 = tpu.matmul %85, %87, %cst_78 {dimension_numbers = #tpu.dot_dimension_numbers<[1], [0], [0], [1], [0, 0, 1, 1], [], []>} : vector<16x16xf32>, vector<16x16xf32>, vector<16x16xf32> -> vector<16x16xf32>
    %c3_79 = arith.constant 3 : index
    %c0_80 = arith.constant 0 : index
    %c0_81 = arith.constant 0 : index
    %89 = vector.load %arg6[%c3_79, %c0_80, %c0_81] : memref<4x16x16xf32, #tpu.memory_space<vmem>>, vector<1x16x16xf32>
    %90 = vector.shape_cast %89 : vector<1x16x16xf32> to vector<16x16xf32>
    %cst_82 = arith.constant dense<0.000000e+00> : vector<16x16xf32>
    %91 = tpu.matmul %85, %90, %cst_82 {dimension_numbers = #tpu.dot_dimension_numbers<[1], [0], [0], [1], [0, 0, 1, 1], [], []>} : vector<16x16xf32>, vector<16x16xf32>, vector<16x16xf32> -> vector<16x16xf32>
    %92 = tpu.concatenate %88, %85, %91 in 0 : vector<16x16xf32>, vector<16x16xf32>, vector<16x16xf32> -> vector<48x16xf32>
    %c3_83 = arith.constant 3 : index
    %c0_84 = arith.constant 0 : index
    %c0_85 = arith.constant 0 : index
    %93 = vector.load %arg7[%c3_83, %c0_84, %c0_85] : memref<4x16x48xf32, #tpu.memory_space<vmem>>, vector<1x16x48xf32>
    %94 = vector.shape_cast %93 : vector<1x16x48xf32> to vector<16x48xf32>
    %cst_86 = arith.constant dense<0.000000e+00> : vector<16x16xf32>
    %95 = tpu.matmul %94, %92, %cst_86 {dimension_numbers = #tpu.dot_dimension_numbers<[1], [0], [0], [1], [0, 0, 1, 1], [], []>} : vector<16x48xf32>, vector<48x16xf32>, vector<16x16xf32> -> vector<16x16xf32>
    %c3_87 = arith.constant 3 : index
    %c0_88 = arith.constant 0 : index
    %c0_89 = arith.constant 0 : index
    %96 = vector.load %arg8[%c3_87, %c0_88, %c0_89] : memref<4x16x1xf32, #tpu.memory_space<vmem>>, vector<1x16x1xf32>
    %97 = vector.shape_cast %96 : vector<1x16x1xf32> to vector<16x1xf32>
    %98 = vector.broadcast %97 : vector<16x1xf32> to vector<16x16xf32>
    %99 = arith.addf %95, %98 : vector<16x16xf32>
    %cst_90 = arith.constant 0.000000e+00 : f32
    %100 = vector.broadcast %cst_90 : f32 to vector<16x16xf32>
    %101 = arith.maximumf %99, %100 : vector<16x16xf32>
    %c3_91 = arith.constant 3 : index
    %c0_92 = arith.constant 0 : index
    %c0_93 = arith.constant 0 : index
    %102 = vector.load %arg9[%c3_91, %c0_92, %c0_93] : memref<4x16x16xf32, #tpu.memory_space<vmem>>, vector<1x16x16xf32>
    %103 = vector.shape_cast %102 : vector<1x16x16xf32> to vector<16x16xf32>
    %cst_94 = arith.constant dense<0.000000e+00> : vector<16x16xf32>
    %104 = tpu.matmul %103, %101, %cst_94 {dimension_numbers = #tpu.dot_dimension_numbers<[1], [0], [0], [1], [0, 0, 1, 1], [], []>} : vector<16x16xf32>, vector<16x16xf32>, vector<16x16xf32> -> vector<16x16xf32>
    %c3_95 = arith.constant 3 : index
    %c0_96 = arith.constant 0 : index
    %c0_97 = arith.constant 0 : index
    %105 = vector.load %arg10[%c3_95, %c0_96, %c0_97] : memref<4x16x1xf32, #tpu.memory_space<vmem>>, vector<1x16x1xf32>
    %106 = vector.shape_cast %105 : vector<1x16x1xf32> to vector<16x1xf32>
    %107 = vector.broadcast %106 : vector<16x1xf32> to vector<16x16xf32>
    %108 = arith.addf %104, %107 : vector<16x16xf32>
    %109 = arith.addf %85, %108 : vector<16x16xf32>
    %110 = arith.mulf %109, %3 : vector<16x16xf32>
    %c0_98 = arith.constant 0 : index
    %c0_99 = arith.constant 0 : index
    %111 = vector.load %arg11[%c0_98, %c0_99] : memref<8x16xf32, #tpu.memory_space<vmem>>, vector<8x16xf32>
    %cst_100 = arith.constant dense<0.000000e+00> : vector<8x16xf32>
    %112 = tpu.matmul %111, %110, %cst_100 {dimension_numbers = #tpu.dot_dimension_numbers<[1], [0], [0], [1], [0, 0, 1, 1], [], []>} : vector<8x16xf32>, vector<16x16xf32>, vector<8x16xf32> -> vector<8x16xf32>
    %c0_101 = arith.constant 0 : index
    %c0_102 = arith.constant 0 : index
    %113 = vector.load %arg12[%c0_101, %c0_102] : memref<8x1xf32, #tpu.memory_space<vmem>>, vector<8x1xf32>
    %114 = vector.broadcast %113 : vector<8x1xf32> to vector<8x16xf32>
    %115 = arith.addf %112, %114 : vector<8x16xf32>
    %116 = vector.broadcast %1 : vector<1x16xf32> to vector<8x16xf32>
    %117 = arith.mulf %115, %116 : vector<8x16xf32>
    %c0_103 = arith.constant 0 : index
    %c0_104 = arith.constant 0 : index
    %c0_105 = arith.constant 0 : index
    %118 = vector.load %arg13[%c0_103, %c0_104, %c0_105] : memref<1x8x16xf32, #tpu.memory_space<vmem>>, vector<1x8x16xf32>
    %119 = vector.shape_cast %118 : vector<1x8x16xf32> to vector<8x16xf32>
    %120 = vector.shape_cast %117 : vector<8x16xf32> to vector<1x8x16xf32>
    tpu.vector_store %arg13[%c0_103, %c0_104, %c0_105], %120 {strides = array<i32>} : memref<1x8x16xf32, #tpu.memory_space<vmem>>, vector<1x8x16xf32>,
    return
  }
  func.func @transform_0(%arg0: i32) -> (i32, i32, i32) {
    %c0_i32 = arith.constant 0 : i32
    %c0_i32_0 = arith.constant 0 : i32
    %c0_i32_1 = arith.constant 0 : i32
    return %arg0, %c0_i32, %c0_i32_0 : i32, i32, i32
  }
  func.func @transform_1(%arg0: i32) -> (i32, i32, i32) {
    %c0_i32 = arith.constant 0 : i32
    %c0_i32_0 = arith.constant 0 : i32
    %c0_i32_1 = arith.constant 0 : i32
    return %arg0, %c0_i32, %c0_i32_0 : i32, i32, i32
  }
  func.func @transform_2(%arg0: i32) -> (i32, i32) {
    %c0_i32 = arith.constant 0 : i32
    %c0_i32_0 = arith.constant 0 : i32
    %c0_i32_1 = arith.constant 0 : i32
    return %c0_i32, %c0_i32_0 : i32, i32
  }
  func.func @transform_3(%arg0: i32) -> (i32, i32) {
    %c0_i32 = arith.constant 0 : i32
    %c0_i32_0 = arith.constant 0 : i32
    %c0_i32_1 = arith.constant 0 : i32
    return %c0_i32, %c0_i32_0 : i32, i32
  }
  func.func @transform_4(%arg0: i32) -> (i32, i32, i32) {
    %c0_i32 = arith.constant 0 : i32
    %c0_i32_0 = arith.constant 0 : i32
    %c0_i32_1 = arith.constant 0 : i32
    %c0_i32_2 = arith.constant 0 : i32
    return %c0_i32, %c0_i32_0, %c0_i32_1 : i32, i32, i32
  }
  func.func @transform_5(%arg0: i32) -> (i32, i32, i32) {
    %c0_i32 = arith.constant 0 : i32
    %c0_i32_0 = arith.constant 0 : i32
    %c0_i32_1 = arith.constant 0 : i32
    %c0_i32_2 = arith.constant 0 : i32
    return %c0_i32, %c0_i32_0, %c0_i32_1 : i32, i32, i32
  }
  func.func @transform_6(%arg0: i32) -> (i32, i32, i32) {
    %c0_i32 = arith.constant 0 : i32
    %c0_i32_0 = arith.constant 0 : i32
    %c0_i32_1 = arith.constant 0 : i32
    %c0_i32_2 = arith.constant 0 : i32
    return %c0_i32, %c0_i32_0, %c0_i32_1 : i32, i32, i32
  }
  func.func @transform_7(%arg0: i32) -> (i32, i32, i32) {
    %c0_i32 = arith.constant 0 : i32
    %c0_i32_0 = arith.constant 0 : i32
    %c0_i32_1 = arith.constant 0 : i32
    %c0_i32_2 = arith.constant 0 : i32
    return %c0_i32, %c0_i32_0, %c0_i32_1 : i32, i32, i32
  }
  func.func @transform_8(%arg0: i32) -> (i32, i32, i32) {
    %c0_i32 = arith.constant 0 : i32
    %c0_i32_0 = arith.constant 0 : i32
    %c0_i32_1 = arith.constant 0 : i32
    %c0_i32_2 = arith.constant 0 : i32
    return %c0_i32, %c0_i32_0, %c0_i32_1 : i32, i32, i32
  }
  func.func @transform_9(%arg0: i32) -> (i32, i32, i32) {
    %c0_i32 = arith.constant 0 : i32
    %c0_i32_0 = arith.constant 0 : i32
    %c0_i32_1 = arith.constant 0 : i32
    %c0_i32_2 = arith.constant 0 : i32
    return %c0_i32, %c0_i32_0, %c0_i32_1 : i32, i32, i32
  }
  func.func @transform_10(%arg0: i32) -> (i32, i32) {
    %c0_i32 = arith.constant 0 : i32
    %c0_i32_0 = arith.constant 0 : i32
    %c0_i32_1 = arith.constant 0 : i32
    return %c0_i32, %c0_i32_0 : i32, i32
  }
  func.func @transform_11(%arg0: i32) -> (i32, i32) {
    %c0_i32 = arith.constant 0 : i32
    %c0_i32_0 = arith.constant 0 : i32
    %c0_i32_1 = arith.constant 0 : i32
    return %c0_i32, %c0_i32_0 : i32, i32
  }
  func.func @transform_12(%arg0: i32) -> (i32, i32, i32) {
    %c0_i32 = arith.constant 0 : i32
    %c0_i32_0 = arith.constant 0 : i32
    %c0_i32_1 = arith.constant 0 : i32
    return %arg0, %c0_i32, %c0_i32_0 : i32, i32, i32
  }
}

</mosaic_0001>

<llo_original>
// kernel: tpu_custom_call.1
$region0: #{tpu_custom_call.1}
  #allocation0 [shape = 'u32[]', space=smem, size = 0x4, offset = 0x4, fixed_abs, tag = 'smem constant byte address 0x4 - core index']
  #allocation1 [shape = 'u32[144,128]{1,0:T(1,128)}', space=vmem, size = 0x12000, scoped, tag = 'internal scratch']
  %s0 = inlined_call_operand.vmem [shape: f32[2,32,16], index: 0, kind: input, shape index: {}]
  %s1 = inlined_call_operand.hbm [shape: f32[2,1,16], index: 1, kind: input, shape index: {}]
  %s2 = inlined_call_operand.hbm [shape: f32[16,32], index: 2, kind: input, shape index: {}]
  %s3 = inlined_call_operand.vmem [shape: f32[16,1], index: 3, kind: input, shape index: {}]
  %s4 = inlined_call_operand.vmem [shape: f32[4,16,16], index: 4, kind: input, shape index: {}]
  %s5 = inlined_call_operand.vmem [shape: f32[4,16,16], index: 5, kind: input, shape index: {}]
  %s6 = inlined_call_operand.vmem [shape: f32[4,16,48], index: 6, kind: input, shape index: {}]
  %s7 = inlined_call_operand.vmem [shape: f32[4,16,1], index: 7, kind: input, shape index: {}]
  %s8 = inlined_call_operand.vmem [shape: f32[4,16,16], index: 8, kind: input, shape index: {}]
  %s9 = inlined_call_operand.vmem [shape: f32[4,16,1], index: 9, kind: input, shape index: {}]
  %s10 = inlined_call_operand.vmem [shape: f32[8,16], index: 10, kind: input, shape index: {}]
  %s11 = inlined_call_operand.vmem [shape: f32[8,1], index: 11, kind: input, shape index: {}]
  %s12 = inlined_call_operand.hbm [shape: f32[2,8,16], index: 12, kind: output, shape index: {}]
  %s13 = sld [smem:[#allocation0]]
  $region89: #{tpu_custom_call.1} parent=0
    _
  %s15 = ssub.s32 1, %s13
  %s16 = scalar_select 0, %s15, %s13
  $region1: #{tpu_custom_call.1} parent=0
    #allocation2 [shape = 'u8[1024]{0}', space=vmem, size = 0x400, scoped, tag = 'input window, operand 1']
    #allocation3 [shape = 's32[2]{0}', space=sflag, size = 0x8, scoped, tag = 'scoped memory for tpu_custom_call.1']
    #allocation4 [shape = 's32[2]{0}', space=sflag, size = 0x8, scoped, tag = 'scoped memory for tpu_custom_call.1']
    #allocation5 [shape = 'u8[8192]{0}', space=vmem, size = 0x2000, scoped, tag = 'input window, operand 2, single buffered']
    #allocation6 [shape = 's32[1]{0}', space=sflag, size = 0x4, scoped, tag = 'scoped memory for tpu_custom_call.1']
    #allocation7 [shape = 'u8[8192]{0}', space=vmem, size = 0x2000, scoped, tag = 'output window, operand 0']
    %17 = vsyncpa [#allocation3], 0
    %s18 = scalar_lea.sflag [#allocation3], 1
    %19 = vsyncpa %s18, 0
    %20 = vsyncpa [#allocation6], 0
    %21 = vsyncpa [#allocation4], 0
    %s22 = scalar_lea.sflag [#allocation4], 1
    %23 = vsyncpa %s22, 0
    loop: start=0, step=1, limit=4
    $region2: #{tpu_custom_call.1} parent=1 // loop_pre_header
      _
    $region3: #{tpu_custom_call.1} parent=1 // loop_header
      %s25 = sphi 0, %s29
      %p26 = scmp.ge.s32.totalorder %s25, 4
      %s35 = sphi 0, %s37
      %s38 = sphi 0, %s35
      %s39 = sphi 0, %s38
      %s55 = sphi 0, %s39
      %s61 = sphi 0, %s63
      %s64 = sphi 0, %s61
      %s65 = sphi 0, %s64
      %s81 = sphi 0, %s65
      %s85 = sphi 0, %s85
      %s87 = sphi 0, %s85
      %s88 = sphi 0, %s87
      %s102 = sphi 0, %s88
      %s106 = sphi 0, %s106
      %s108 = sphi 0, %s106
      %s109 = sphi 0, %s108
      %s123 = sphi 0, %s109
      %s127 = sphi 0, %s127
      %s129 = sphi 0, %s127
      %s130 = sphi 0, %s129
      %s144 = sphi 0, %s130
      %s148 = sphi 0, %s148
      %s150 = sphi 0, %s148
      %s151 = sphi 0, %s150
      %s165 = sphi 0, %s151
      %s169 = sphi 0, %s169
      %s171 = sphi 0, %s169
      %s172 = sphi 0, %s171
      %s186 = sphi 0, %s172
      %s190 = sphi 0, %s190
      %s192 = sphi 0, %s190
      %s193 = sphi 0, %s192
      %s207 = sphi 0, %s193
      %s211 = sphi 0, %s211
      %s213 = sphi 0, %s211
      %s214 = sphi 0, %s213
      %s228 = sphi 0, %s214
      %s232 = sphi 0, %s232
      %s234 = sphi 0, %s232
      %s235 = sphi 0, %s234
      %s249 = sphi 0, %s235
      %s253 = sphi 0, %s253
      %s255 = sphi 0, %s253
      %s256 = sphi 0, %s255
      %s270 = sphi 0, %s256
      %s274 = sphi 0, %s274
      %s276 = sphi 0, %s274
      %s277 = sphi 0, %s276
      %s291 = sphi 0, %s277
      %s297 = sphi 0, %s299
      %s300 = sphi 0, %s297
      %s301 = sphi 0, %s300
      %s317 = sphi 0, %s301
    $region4: #{tpu_custom_call.1} parent=1 // loop_header_branch
      %28 = sbr.rel (%p26) target = $region8
    $region5: #{tpu_custom_call.1} parent=1 // loop_body
      %s30 = ssub.s32 %s25, 1
      %s31 = ssub.s32 %s25, 2
      %s32 = sadd.s32 %s25, 1
      %s33 = ssub.s32 %s25, %s32
      %p34 = scmp.eq.s32.totalorder %s33, 0
      %s36 = sadd.s32 %s35, 1
      %s37 = scalar_select %p34, %s35, %s36
      %p40 = pneg %p34
      %p41 = scmp.eq.s32.totalorder %s25, 1
      %p42 = por %p40, %p41
      %p43 = scmp.ne.s32.totalorder %s35, %s38
      %p44 = scmp.eq.s32.totalorder %s25, 0
      %p45 = por %p43, %p44
      %p46 = scmp.ne.s32.totalorder %s35, %s38
      %p47 = scmp.eq.s32.totalorder %s30, 1
      %p48 = por %p46, %p47
      %p49 = scmp.ne.s32.totalorder %s38, %s39
      %p50 = scmp.eq.s32.totalorder %s30, 0
      %p51 = por %p49, %p50
      %p52 = scmp.ne.s32.totalorder %s38, %s39
      %p53 = scmp.eq.s32.totalorder %s31, 1
      %p54 = por %p52, %p53
      %p56 = scmp.ne.s32.totalorder %s39, %s55
      %p57 = scmp.eq.s32.totalorder %s31, 0
      %p58 = por %p56, %p57
      %s59 = ssub.s32 %s25, %s32
      %p60 = scmp.eq.s32.totalorder %s59, 0
      %s62 = sadd.s32 %s61, 1
      %s63 = scalar_select %p60, %s61, %s62
      %p66 = pneg %p60
      %p67 = scmp.eq.s32.totalorder %s25, 1
      %p68 = por %p66, %p67
      %p69 = scmp.ne.s32.totalorder %s61, %s64
      %p70 = scmp.eq.s32.totalorder %s25, 0
      %p71 = por %p69, %p70
      %p72 = scmp.ne.s32.totalorder %s61, %s64
      %p73 = scmp.eq.s32.totalorder %s30, 1
      %p74 = por %p72, %p73
      %p75 = scmp.ne.s32.totalorder %s64, %s65
      %p76 = scmp.eq.s32.totalorder %s30, 0
      %p77 = por %p75, %p76
      %p78 = scmp.ne.s32.totalorder %s64, %s65
      %p79 = scmp.eq.s32.totalorder %s31, 1
      %p80 = por %p78, %p79
      %p82 = scmp.ne.s32.totalorder %s65, %s81
      %p83 = scmp.eq.s32.totalorder %s31, 0
      %p84 = por %p82, %p83
      %s86 = sadd.s32 %s85, 1
      %p89 = scmp.eq.s32.totalorder %s25, 1
      %p90 = scmp.ne.s32.totalorder %s85, %s87
      %p91 = scmp.eq.s32.totalorder %s25, 0
      %p92 = por %p90, %p91
      %p93 = scmp.ne.s32.totalorder %s85, %s87
      %p94 = scmp.eq.s32.totalorder %s30, 1
      %p95 = por %p93, %p94
      %p96 = scmp.ne.s32.totalorder %s87, %s88
      %p97 = scmp.eq.s32.totalorder %s30, 0
      %p98 = por %p96, %p97
      %p99 = scmp.ne.s32.totalorder %s87, %s88
      %p100 = scmp.eq.s32.totalorder %s31, 1
      %p101 = por %p99, %p100
      %p103 = scmp.ne.s32.totalorder %s88, %s102
      %p104 = scmp.eq.s32.totalorder %s31, 0
      %p105 = por %p103, %p104
      %s107 = sadd.s32 %s106, 1
      %p110 = scmp.eq.s32.totalorder %s25, 1
      %p111 = scmp.ne.s32.totalorder %s106, %s108
      %p112 = scmp.eq.s32.totalorder %s25, 0
      %p113 = por %p111, %p112
      %p114 = scmp.ne.s32.totalorder %s106, %s108
      %p115 = scmp.eq.s32.totalorder %s30, 1
      %p116 = por %p114, %p115
      %p117 = scmp.ne.s32.totalorder %s108, %s109
      %p118 = scmp.eq.s32.totalorder %s30, 0
      %p119 = por %p117, %p118
      %p120 = scmp.ne.s32.totalorder %s108, %s109
      %p121 = scmp.eq.s32.totalorder %s31, 1
      %p122 = por %p120, %p121
      %p124 = scmp.ne.s32.totalorder %s109, %s123
      %p125 = scmp.eq.s32.totalorder %s31, 0
      %p126 = por %p124, %p125
      %s128 = sadd.s32 %s127, 1
      %p131 = scmp.eq.s32.totalorder %s25, 1
      %p132 = scmp.ne.s32.totalorder %s127, %s129
      %p133 = scmp.eq.s32.totalorder %s25, 0
      %p134 = por %p132, %p133
      %p135 = scmp.ne.s32.totalorder %s127, %s129
      %p136 = scmp.eq.s32.totalorder %s30, 1
      %p137 = por %p135, %p136
      %p138 = scmp.ne.s32.totalorder %s129, %s130
      %p139 = scmp.eq.s32.totalorder %s30, 0
      %p140 = por %p138, %p139
      %p141 = scmp.ne.s32.totalorder %s129, %s130
      %p142 = scmp.eq.s32.totalorder %s31, 1
      %p143 = por %p141, %p142
      %p145 = scmp.ne.s32.totalorder %s130, %s144
      %p146 = scmp.eq.s32.totalorder %s31, 0
      %p147 = por %p145, %p146
      %s149 = sadd.s32 %s148, 1
      %p152 = scmp.eq.s32.totalorder %s25, 1
      %p153 = scmp.ne.s32.totalorder %s148, %s150
      %p154 = scmp.eq.s32.totalorder %s25, 0
      %p155 = por %p153, %p154
      %p156 = scmp.ne.s32.totalorder %s148, %s150
      %p157 = scmp.eq.s32.totalorder %s30, 1
      %p158 = por %p156, %p157
      %p159 = scmp.ne.s32.totalorder %s150, %s151
      %p160 = scmp.eq.s32.totalorder %s30, 0
      %p161 = por %p159, %p160
      %p162 = scmp.ne.s32.totalorder %s150, %s151
      %p163 = scmp.eq.s32.totalorder %s31, 1
      %p164 = por %p162, %p163
      %p166 = scmp.ne.s32.totalorder %s151, %s165
      %p167 = scmp.eq.s32.totalorder %s31, 0
      %p168 = por %p166, %p167
      %s170 = sadd.s32 %s169, 1
      %p173 = scmp.eq.s32.totalorder %s25, 1
      %p174 = scmp.ne.s32.totalorder %s169, %s171
      %p175 = scmp.eq.s32.totalorder %s25, 0
      %p176 = por %p174, %p175
      %p177 = scmp.ne.s32.totalorder %s169, %s171
      %p178 = scmp.eq.s32.totalorder %s30, 1
      %p179 = por %p177, %p178
      %p180 = scmp.ne.s32.totalorder %s171, %s172
      %p181 = scmp.eq.s32.totalorder %s30, 0
      %p182 = por %p180, %p181
      %p183 = scmp.ne.s32.totalorder %s171, %s172
      %p184 = scmp.eq.s32.totalorder %s31, 1
      %p185 = por %p183, %p184
      %p187 = scmp.ne.s32.totalorder %s172, %s186
      %p188 = scmp.eq.s32.totalorder %s31, 0
      %p189 = por %p187, %p188
      %s191 = sadd.s32 %s190, 1
      %p194 = scmp.eq.s32.totalorder %s25, 1
      %p195 = scmp.ne.s32.totalorder %s190, %s192
      %p196 = scmp.eq.s32.totalorder %s25, 0
      %p197 = por %p195, %p196
      %p198 = scmp.ne.s32.totalorder %s190, %s192
      %p199 = scmp.eq.s32.totalorder %s30, 1
      %p200 = por %p198, %p199
      %p201 = scmp.ne.s32.totalorder %s192, %s193
      %p202 = scmp.eq.s32.totalorder %s30, 0
      %p203 = por %p201, %p202
      %p204 = scmp.ne.s32.totalorder %s192, %s193
      %p205 = scmp.eq.s32.totalorder %s31, 1
      %p206 = por %p204, %p205
      %p208 = scmp.ne.s32.totalorder %s193, %s207
      %p209 = scmp.eq.s32.totalorder %s31, 0
      %p210 = por %p208, %p209
      %s212 = sadd.s32 %s211, 1
      %p215 = scmp.eq.s32.totalorder %s25, 1
      %p216 = scmp.ne.s32.totalorder %s211, %s213
      %p217 = scmp.eq.s32.totalorder %s25, 0
      %p218 = por %p216, %p217
      %p219 = scmp.ne.s32.totalorder %s211, %s213
      %p220 = scmp.eq.s32.totalorder %s30, 1
      %p221 = por %p219, %p220
      %p222 = scmp.ne.s32.totalorder %s213, %s214
      %p223 = scmp.eq.s32.totalorder %s30, 0
      %p224 = por %p222, %p223
      %p225 = scmp.ne.s32.totalorder %s213, %s214
      %p226 = scmp.eq.s32.totalorder %s31, 1
      %p227 = por %p225, %p226
      %p229 = scmp.ne.s32.totalorder %s214, %s228
      %p230 = scmp.eq.s32.totalorder %s31, 0
      %p231 = por %p229, %p230
      %s233 = sadd.s32 %s232, 1
      %p236 = scmp.eq.s32.totalorder %s25, 1
      %p237 = scmp.ne.s32.totalorder %s232, %s234
      %p238 = scmp.eq.s32.totalorder %s25, 0
      %p239 = por %p237, %p238
      %p240 = scmp.ne.s32.totalorder %s232, %s234
      %p241 = scmp.eq.s32.totalorder %s30, 1
      %p242 = por %p240, %p241
      %p243 = scmp.ne.s32.totalorder %s234, %s235
      %p244 = scmp.eq.s32.totalorder %s30, 0
      %p245 = por %p243, %p244
      %p246 = scmp.ne.s32.totalorder %s234, %s235
      %p247 = scmp.eq.s32.totalorder %s31, 1
      %p248 = por %p246, %p247
      %p250 = scmp.ne.s32.totalorder %s235, %s249
      %p251 = scmp.eq.s32.totalorder %s31, 0
      %p252 = por %p250, %p251
      %s254 = sadd.s32 %s253, 1
      %p257 = scmp.eq.s32.totalorder %s25, 1
      %p258 = scmp.ne.s32.totalorder %s253, %s255
      %p259 = scmp.eq.s32.totalorder %s25, 0
      %p260 = por %p258, %p259
      %p261 = scmp.ne.s32.totalorder %s253, %s255
      %p262 = scmp.eq.s32.totalorder %s30, 1
      %p263 = por %p261, %p262
      %p264 = scmp.ne.s32.totalorder %s255, %s256
      %p265 = scmp.eq.s32.totalorder %s30, 0
      %p266 = por %p264, %p265
      %p267 = scmp.ne.s32.totalorder %s255, %s256
      %p268 = scmp.eq.s32.totalorder %s31, 1
      %p269 = por %p267, %p268
      %p271 = scmp.ne.s32.totalorder %s256, %s270
      %p272 = scmp.eq.s32.totalorder %s31, 0
      %p273 = por %p271, %p272
      %s275 = sadd.s32 %s274, 1
      %p278 = scmp.eq.s32.totalorder %s25, 1
      %p279 = scmp.ne.s32.totalorder %s274, %s276
      %p280 = scmp.eq.s32.totalorder %s25, 0
      %p281 = por %p279, %p280
      %p282 = scmp.ne.s32.totalorder %s274, %s276
      %p283 = scmp.eq.s32.totalorder %s30, 1
      %p284 = por %p282, %p283
      %p285 = scmp.ne.s32.totalorder %s276, %s277
      %p286 = scmp.eq.s32.totalorder %s30, 0
      %p287 = por %p285, %p286
      %p288 = scmp.ne.s32.totalorder %s276, %s277
      %p289 = scmp.eq.s32.totalorder %s31, 1
      %p290 = por %p288, %p289
      %p292 = scmp.ne.s32.totalorder %s277, %s291
      %p293 = scmp.eq.s32.totalorder %s31, 0
      %p294 = por %p292, %p293
      %s295 = ssub.s32 %s25, %s32
      %p296 = scmp.eq.s32.totalorder %s295, 0
      %s298 = sadd.s32 %s297, 1
      %s299 = scalar_select %p296, %s297, %s298
      %p302 = pneg %p296
      %p303 = scmp.eq.s32.totalorder %s25, 1
      %p304 = por %p302, %p303
      %p305 = scmp.ne.s32.totalorder %s297, %s300
      %p306 = scmp.eq.s32.totalorder %s25, 0
      %p307 = por %p305, %p306
      %p308 = scmp.ne.s32.totalorder %s297, %s300
      %p309 = scmp.eq.s32.totalorder %s30, 1
      %p310 = por %p308, %p309
      %p311 = scmp.ne.s32.totalorder %s300, %s301
      %p312 = scmp.eq.s32.totalorder %s30, 0
      %p313 = por %p311, %p312
      %p314 = scmp.ne.s32.totalorder %s300, %s301
      %p315 = scmp.eq.s32.totalorder %s31, 1
      %p316 = por %p314, %p315
      %p318 = scmp.ne.s32.totalorder %s301, %s317
      %p319 = scmp.eq.s32.totalorder %s31, 0
      %p320 = por %p318, %p319
      %p321 = scmp.le.s32.totalorder 1, %s25
      %p322 = scmp.lt.s32.totalorder %s25, 3
      %p323 = pnand %p321, %p322
      %p324 = pneg %p323
      // Predicated region
      $region9: #{tpu_custom_call.1} parent=5 // pred_check
        _
      $region10: #{tpu_custom_call.1} parent=5 // pred_check_branch
        %326 = sbr.rel (%p323) target = $region12
      $region11: #{tpu_custom_call.1} parent=5 // pred_region
        %s327 = ssub.s32 %s25, 1
        // Predicated region
        $region13: #{tpu_custom_call.1} parent=11 // pred_check
          %p328 = pneg %p98
        $region14: #{tpu_custom_call.1} parent=11 // pred_check_branch
          %330 = sbr.rel (%p328) target = $region16
        $region15: #{tpu_custom_call.1} parent=11 // pred_region
          %s332 = ssub.s32 256, 256
          %333 = vsyncadd [#allocation6], %s332
          %s334 = sshll.u32 [#allocation5], 4
          %s335 = int_to_ptr.vmem [resolvable:$true] %s334
          %340 = dma.hbm_to_vmem [thread:$0]  %s2, 256, %s335, [#allocation6], 128, 128, 8
        $region16: #{tpu_custom_call.1} parent=11 // pred_fallthru
          _
        // Predicated region
        $region17: #{tpu_custom_call.1} parent=11 // pred_check
          %p341 = pneg %p119
        $region18: #{tpu_custom_call.1} parent=11 // pred_check_branch
          %343 = sbr.rel (%p341) target = $region20
        $region19: #{tpu_custom_call.1} parent=11 // pred_region
          _
        $region20: #{tpu_custom_call.1} parent=11 // pred_fallthru
          _
        // Predicated region
        $region21: #{tpu_custom_call.1} parent=11 // pred_check
          %p344 = pneg %p140
        $region22: #{tpu_custom_call.1} parent=11 // pred_check_branch
          %346 = sbr.rel (%p344) target = $region24
        $region23: #{tpu_custom_call.1} parent=11 // pred_region
          _
        $region24: #{tpu_custom_call.1} parent=11 // pred_fallthru
          _
        // Predicated region
        $region25: #{tpu_custom_call.1} parent=11 // pred_check
          %p347 = pneg %p161
        $region26: #{tpu_custom_call.1} parent=11 // pred_check_branch
          %349 = sbr.rel (%p347) target = $region28
        $region27: #{tpu_custom_call.1} parent=11 // pred_region
          _
        $region28: #{tpu_custom_call.1} parent=11 // pred_fallthru
          _
        // Predicated region
        $region29: #{tpu_custom_call.1} parent=11 // pred_check
          %p350 = pneg %p182
        $region30: #{tpu_custom_call.1} parent=11 // pred_check_branch
          %352 = sbr.rel (%p350) target = $region32
        $region31: #{tpu_custom_call.1} parent=11 // pred_region
          _
        $region32: #{tpu_custom_call.1} parent=11 // pred_fallthru
          _
        // Predicated region
        $region33: #{tpu_custom_call.1} parent=11 // pred_check
          %p353 = pneg %p203
        $region34: #{tpu_custom_call.1} parent=11 // pred_check_branch
          %355 = sbr.rel (%p353) target = $region36
        $region35: #{tpu_custom_call.1} parent=11 // pred_region
          _
        $region36: #{tpu_custom_call.1} parent=11 // pred_fallthru
          _
        // Predicated region
        $region37: #{tpu_custom_call.1} parent=11 // pred_check
          %p356 = pneg %p224
        $region38: #{tpu_custom_call.1} parent=11 // pred_check_branch
          %358 = sbr.rel (%p356) target = $region40
        $region39: #{tpu_custom_call.1} parent=11 // pred_region
          _
        $region40: #{tpu_custom_call.1} parent=11 // pred_fallthru
          _
        // Predicated region
        $region41: #{tpu_custom_call.1} parent=11 // pred_check
          %p359 = pneg %p245
        $region42: #{tpu_custom_call.1} parent=11 // pred_check_branch
          %361 = sbr.rel (%p359) target = $region44
        $region43: #{tpu_custom_call.1} parent=11 // pred_region
          _
        $region44: #{tpu_custom_call.1} parent=11 // pred_fallthru
          _
        // Predicated region
        $region45: #{tpu_custom_call.1} parent=11 // pred_check
          %p362 = pneg %p266
        $region46: #{tpu_custom_call.1} parent=11 // pred_check_branch
          %364 = sbr.rel (%p362) target = $region48
        $region47: #{tpu_custom_call.1} parent=11 // pred_region
          _
        $region48: #{tpu_custom_call.1} parent=11 // pred_fallthru
          _
        // Predicated region
        $region49: #{tpu_custom_call.1} parent=11 // pred_check
          %p365 = pneg %p287
        $region50: #{tpu_custom_call.1} parent=11 // pred_check_branch
          %367 = sbr.rel (%p365) target = $region52
        $region51: #{tpu_custom_call.1} parent=11 // pred_region
          _
        $region52: #{tpu_custom_call.1} parent=11 // pred_fallthru
          _
      $region12: #{tpu_custom_call.1} parent=5 // pred_fallthru
        _
      %p368 = scmp.lt.s32.totalorder %s25, 2
      // Predicated region
      $region53: #{tpu_custom_call.1} parent=5 // pred_check
        %p369 = pneg %p368
      $region54: #{tpu_custom_call.1} parent=5 // pred_check_branch
        %371 = sbr.rel (%p369) target = $region56
      $region55: #{tpu_custom_call.1} parent=5 // pred_region
        // Predicated region
        $region57: #{tpu_custom_call.1} parent=55 // pred_check
          %p372 = pneg %p45
        $region58: #{tpu_custom_call.1} parent=55 // pred_check_branch
          %374 = sbr.rel (%p372) target = $region60
        $region59: #{tpu_custom_call.1} parent=55 // pred_region
          %p375 = scmp.lt.s32.totalorder %s25, 1
          %s376 = scalar_select %p375, %s25, 1
          %s377 = smul.addr %s376, 4
          %s378 = smul.addr %s377, 8
          %s379 = scalar_lea.vmem %s0, %s378
        $region60: #{tpu_custom_call.1} parent=55 // pred_fallthru
          _
        // Predicated region
        $region61: #{tpu_custom_call.1} parent=55 // pred_check
          %p380 = pneg %p71
        $region62: #{tpu_custom_call.1} parent=55 // pred_check_branch
          %382 = sbr.rel (%p380) target = $region64
        $region63: #{tpu_custom_call.1} parent=55 // pred_region
          %s383 = sand.u32 %s61, 1
          %s384 = scalar_lea.sflag [#allocation3], %s383
          %s385 = sand.u32 %s61, 1
          %s386 = scalar_lea.vmem [#allocation2], %s385
          %s388 = ssub.s32 16, 16
          %389 = vsyncadd %s384, %s388
          %s390 = smul.addr %s25, 16
          %s391 = scalar_lea.hbm %s1, %s390
          %s393 = sshll.u32 %s386, 4
          %s394 = int_to_ptr.vmem [resolvable:$true] %s393
          %396 = dma.hbm_to_vmem [thread:$0]  %s391, 16, %s394, %s384
        $region64: #{tpu_custom_call.1} parent=55 // pred_fallthru
          _
      $region56: #{tpu_custom_call.1} parent=5 // pred_fallthru
        _
      %p397 = scmp.le.s32.totalorder 1, %s25
      %p398 = scmp.lt.s32.totalorder %s25, 3
      %p399 = pnand %p397, %p398
      %p400 = pneg %p399
      // Predicated region
      $region65: #{tpu_custom_call.1} parent=5 // pred_check
        _
      $region66: #{tpu_custom_call.1} parent=5 // pred_check_branch
        %402 = sbr.rel (%p399) target = $region68
      $region67: #{tpu_custom_call.1} parent=5 // pred_region
        %s403 = ssub.s32 %s25, 1
        %s404 = sand.u32 %s64, 1
        %s405 = scalar_lea.sflag [#allocation3], %s404
        %s406 = sand.u32 %s64, 1
        %s407 = scalar_lea.vmem [#allocation2], %s406
        // Predicated region
        $region69: #{tpu_custom_call.1} parent=67 // pred_check
          %p408 = pneg %p77
        $region70: #{tpu_custom_call.1} parent=67 // pred_check_branch
          %410 = sbr.rel (%p408) target = $region72
        $region71: #{tpu_custom_call.1} parent=67 // pred_region
          %411 = dma.done %s405, 16
        $region72: #{tpu_custom_call.1} parent=67 // pred_fallthru
          _
        // Predicated region
        $region73: #{tpu_custom_call.1} parent=67 // pred_check
          %p412 = pneg %p98
        $region74: #{tpu_custom_call.1} parent=67 // pred_check_branch
          %414 = sbr.rel (%p412) target = $region76
        $region75: #{tpu_custom_call.1} parent=67 // pred_region
          %415 = dma.done [#allocation6], 256
        $region76: #{tpu_custom_call.1} parent=67 // pred_fallthru
          _
        %p416 = scmp.lt.s32.totalorder %s30, 1
        %s417 = scalar_select %p416, %s30, 1
        %s418 = smul.addr %s417, 4
        %s419 = smul.addr %s418, 8
        %s420 = scalar_lea.vmem %s0, %s419
        %p421 = pneg %p51
        %p422 = pneg %p48
        %s423 = sand.u32 %s64, 1
        %s424 = scalar_lea.sflag [#allocation3], %s423
        %s425 = sand.u32 %s64, 1
        %s426 = scalar_lea.vmem [#allocation2], %s425
        %p427 = pneg %p77
        %p428 = pneg %p74
        %p429 = pneg %p98
        %p430 = pneg %p95
        %p431 = pneg %p119
        %p432 = pneg %p116
        %p433 = pneg %p140
        %p434 = pneg %p137
        %p435 = pneg %p161
        %p436 = pneg %p158
        %p437 = pneg %p182
        %p438 = pneg %p179
        %p439 = pneg %p203
        %p440 = pneg %p200
        %p441 = pneg %p224
        %p442 = pneg %p221
        %p443 = pneg %p245
        %p444 = pneg %p242
        %p445 = pneg %p266
        %p446 = pneg %p263
        %p447 = pneg %p287
        %p448 = pneg %p284
        %p449 = pneg %p313
        %p450 = pneg %p310
        %s451 = sand.u32 %s300, 1
        %s452 = scalar_lea.sflag [#allocation4], %s451
        %s453 = sand.u32 %s300, 1
        %s454 = smul.addr %s453, 8
        %s455 = scalar_lea.vmem [#allocation7], %s454
        %p456 = scmp.lt.s32.totalorder %s30, 1
        %s457 = scalar_select %p456, %s30, 1
        %s458 = smul.addr %s457, 4
        %s459 = smul.addr %s458, 8
        %s460 = scalar_lea.vmem %s0, %s459
        %v461 = vld [vmem:[%s407] sm:$0x1]
        %v463 = vlaneseq
        %v464 = vshrl.u32 %v463, 7
        %v465 = vsub.s32 0, %v464
        %v466 = vrot.slane %v461, %v465
        %v468 = vld [vmem:[%s460] sm:$0xff]
        %v469 = vld [vmem:[%s460 + $0x8] sm:$0xff]
        %v470 = vld [vmem:[%s460 + $0x10] sm:$0xff]
        %v471 = vld [vmem:[%s460 + $0x18] sm:$0xff]
        %v472 = vld [vmem:[#allocation5] sm:$0xff]
        %v473 = vld [vmem:[#allocation5 + $0x8] sm:$0xff]
        %v474 = vld [vmem:[%s3] sm:$0xff]
        %v475 = vld [vmem:[%s3 + $0x8] sm:$0xff]
        %477 = vset.pattern.permute.xlu0 0
        %478 = vperm.xlu0 %477, %v474
        %v479 = vpop.permute.xlu0 %478
        %482 = vset.pattern.permute.xlu0 0
        %483 = vperm.xlu0 %482, %v475
        %v484 = vpop.permute.xlu0 %483
        %vm486 = vcmask 261120
        %v488 = vsel %vm486, %v472, 0
        %v491 = vsel %vm486, %v473, 0
        %493 = vmatprep.subr.mxu0 0.0
        %494 = vmatpush1.msra.mxu0 %v468
        %495 = vmatprep.subr.mxu0 0.0
        %496 = vmatpush1.msra.mxu0 %v469
        %497 = vmatprep.subr.mxu0 0.0
        %498 = vmatpush1.msra.mxu0 %v470
        %499 = vmatprep.subr.mxu0 0.0
        %500 = vmatpush1.msra.mxu0 %v471
        %501 = vmatprep.subr.mxu0 0.0
        %502 = vmatpush1.msra.mxu0 0.0
        %503 = vmatprep.subr.mxu0 0.0
        %504 = vmatpush1.msra.mxu0 0.0
        %505 = vmatprep.subr.mxu0 0.0
        %506 = vmatpush1.msra.mxu0 0.0
        %507 = vmatprep.subr.mxu0 0.0
        %508 = vmatpush1.msra.mxu0 0.0
        %509 = vmatprep.subr.mxu0 0.0
        %510 = vmatpush1.msra.mxu0 0.0
        %511 = vmatprep.subr.mxu0 0.0
        %512 = vmatpush1.msra.mxu0 0.0
        %513 = vmatprep.subr.mxu0 0.0
        %514 = vmatpush1.msra.mxu0 0.0
        %515 = vmatprep.subr.mxu0 0.0
        %516 = vmatpush1.msra.mxu0 0.0
        %517 = vmatprep.subr.mxu0 0.0
        %518 = vmatpush1.msra.mxu0 0.0
        %519 = vmatprep.subr.mxu0 0.0
        %520 = vmatpush1.msra.mxu0 0.0
        %521 = vmatprep.subr.mxu0 0.0
        %522 = vmatpush1.msra.mxu0 0.0
        %523 = vmatprep.subr.mxu0 0.0
        %524 = vmatpush1.msra.mxu0 0.0
        %525 = vmatprep.subr.mxu0 0.0
        %526 = vmatpush1.msra.mxu0 0.0
        %527 = vmatprep.subr.mxu0 0.0
        %528 = vmatpush1.msra.mxu0 0.0
        %529 = vmatprep.subr.mxu0 0.0
        %530 = vmatpush1.msra.mxu0 0.0
        %531 = vmatprep.subr.mxu0 0.0
        %532 = vmatpush1.msra.mxu0 0.0
        %533 = vmatprep.subr.mxu0 0.0
        %534 = vmatpush1.msra.mxu0 0.0
        %535 = vmatprep.subr.mxu0 0.0
        %536 = vmatpush1.msra.mxu0 0.0
        %537 = vmatprep.subr.mxu0 0.0
        %538 = vmatpush1.msra.mxu0 0.0
        %539 = vmatprep.subr.mxu0 0.0
        %540 = vmatpush1.msra.mxu0 0.0
        %541 = vmatprep.subr.mxu0 0.0
        %542 = vmatpush1.msra.mxu0 0.0
        %543 = vmatprep.subr.mxu0 0.0
        %544 = vmatpush1.msra.mxu0 0.0
        %545 = vmatprep.subr.mxu0 0.0
        %546 = vmatpush1.msra.mxu0 0.0
        %547 = vmatprep.subr.mxu0 0.0
        %548 = vmatpush1.msra.mxu0 0.0
        %549 = vmatprep.subr.mxu0 0.0
        %550 = vmatpush1.msra.mxu0 0.0
        %551 = vmatprep.subr.mxu0 0.0
        %552 = vmatpush1.msra.mxu0 0.0
        %553 = vmatprep.subr.mxu0 0.0
        %554 = vmatpush1.msra.mxu0 0.0
        %555 = vmatprep.subr.mxu0 0.0
        %556 = vmatpush1.msra.mxu0 0.0
        %557 = vmatprep.mubr.f32.mxu0 0.0
        %558 = vmatmul.mubr.f32.gmra.mrb[0].mxu0 %v488
        %v559 = vpop.f32.mrb[0].mxu0
        %v560 = vadd.f32 %v479, %v559
        %v561 = vpop.f32.mrb[0].mxu0
        %562 = vmatprep.mubr.f32.mxu0 0.0
        %563 = vmatmul.mubr.f32.gmra.mrb[0].mxu0 %v491
        %v564 = vpop.f32.mrb[0].mxu0
        %v565 = vadd.f32 %v484, %v564
        %v566 = vpop.f32.mrb[0].mxu0
        %567 = vdwg.mxu0
        %v568 = vld [vmem:[%s4] sm:$0xff]
        %v569 = vld [vmem:[%s4 + $0x8] sm:$0xff]
        %vm570 = vcmask 130048
        %v572 = vsel %vm570, %v560, 0
        %v575 = vsel %vm570, %v565, 0
        %577 = vmatprep.subr.mxu0 0.0
        %578 = vmatpush1.msra.mxu0 %v568
        %579 = vmatprep.subr.mxu0 0.0
        %580 = vmatpush1.msra.mxu0 %v569
        %581 = vmatprep.subr.mxu0 0.0
        %582 = vmatpush1.msra.mxu0 0.0
        %583 = vmatprep.subr.mxu0 0.0
        %584 = vmatpush1.msra.mxu0 0.0
        %585 = vmatprep.subr.mxu0 0.0
        %586 = vmatpush1.msra.mxu0 0.0
        %587 = vmatprep.subr.mxu0 0.0
        %588 = vmatpush1.msra.mxu0 0.0
        %589 = vmatprep.subr.mxu0 0.0
        %590 = vmatpush1.msra.mxu0 0.0
        %591 = vmatprep.subr.mxu0 0.0
        %592 = vmatpush1.msra.mxu0 0.0
        %593 = vmatprep.subr.mxu0 0.0
        %594 = vmatpush1.msra.mxu0 0.0
        %595 = vmatprep.subr.mxu0 0.0
        %596 = vmatpush1.msra.mxu0 0.0
        %597 = vmatprep.subr.mxu0 0.0
        %598 = vmatpush1.msra.mxu0 0.0
        %599 = vmatprep.subr.mxu0 0.0
        %600 = vmatpush1.msra.mxu0 0.0
        %601 = vmatprep.subr.mxu0 0.0
        %602 = vmatpush1.msra.mxu0 0.0
        %603 = vmatprep.subr.mxu0 0.0
        %604 = vmatpush1.msra.mxu0 0.0
        %605 = vmatprep.subr.mxu0 0.0
        %606 = vmatpush1.msra.mxu0 0.0
        %607 = vmatprep.subr.mxu0 0.0
        %608 = vmatpush1.msra.mxu0 0.0
        %609 = vmatprep.subr.mxu0 0.0
        %610 = vmatpush1.msra.mxu0 0.0
        %611 = vmatprep.subr.mxu0 0.0
        %612 = vmatpush1.msra.mxu0 0.0
        %613 = vmatprep.subr.mxu0 0.0
        %614 = vmatpush1.msra.mxu0 0.0
        %615 = vmatprep.subr.mxu0 0.0
        %616 = vmatpush1.msra.mxu0 0.0
        %617 = vmatprep.subr.mxu0 0.0
        %618 = vmatpush1.msra.mxu0 0.0
        %619 = vmatprep.subr.mxu0 0.0
        %620 = vmatpush1.msra.mxu0 0.0
        %621 = vmatprep.subr.mxu0 0.0
        %622 = vmatpush1.msra.mxu0 0.0
        %623 = vmatprep.subr.mxu0 0.0
        %624 = vmatpush1.msra.mxu0 0.0
        %625 = vmatprep.subr.mxu0 0.0
        %626 = vmatpush1.msra.mxu0 0.0
        %627 = vmatprep.subr.mxu0 0.0
        %628 = vmatpush1.msra.mxu0 0.0
        %629 = vmatprep.subr.mxu0 0.0
        %630 = vmatpush1.msra.mxu0 0.0
        %631 = vmatprep.subr.mxu0 0.0
        %632 = vmatpush1.msra.mxu0 0.0
        %633 = vmatprep.subr.mxu0 0.0
        %634 = vmatpush1.msra.mxu0 0.0
        %635 = vmatprep.subr.mxu0 0.0
        %636 = vmatpush1.msra.mxu0 0.0
        %637 = vmatprep.subr.mxu0 0.0
        %638 = vmatpush1.msra.mxu0 0.0
        %639 = vmatprep.subr.mxu0 0.0
        %640 = vmatpush1.msra.mxu0 0.0
        %641 = vmatprep.mubr.f32.mxu0 0.0
        %642 = vmatmul.mubr.f32.gmra.mrb[0].mxu0 %v572
        %v643 = vpop.f32.mrb[0].mxu0
        %v644 = vadd.f32 0.0, %v643
        %v645 = vpop.f32.mrb[0].mxu0
        %646 = vmatprep.mubr.f32.mxu0 0.0
        %647 = vmatmul.mubr.f32.gmra.mrb[0].mxu0 %v575
        %v648 = vpop.f32.mrb[0].mxu0
        %v649 = vadd.f32 0.0, %v648
        %v650 = vpop.f32.mrb[0].mxu0
        %651 = vdwg.mxu0
        %v652 = vld [vmem:[%s5] sm:$0xff]
        %v653 = vld [vmem:[%s5 + $0x8] sm:$0xff]
        %654 = vmatprep.subr.mxu0 0.0
        %655 = vmatpush1.msra.mxu0 %v652
        %656 = vmatprep.subr.mxu0 0.0
        %657 = vmatpush1.msra.mxu0 %v653
        %658 = vmatprep.subr.mxu0 0.0
        %659 = vmatpush1.msra.mxu0 0.0
        %660 = vmatprep.subr.mxu0 0.0
        %661 = vmatpush1.msra.mxu0 0.0
        %662 = vmatprep.subr.mxu0 0.0
        %663 = vmatpush1.msra.mxu0 0.0
        %664 = vmatprep.subr.mxu0 0.0
        %665 = vmatpush1.msra.mxu0 0.0
        %666 = vmatprep.subr.mxu0 0.0
        %667 = vmatpush1.msra.mxu0 0.0
        %668 = vmatprep.subr.mxu0 0.0
        %669 = vmatpush1.msra.mxu0 0.0
        %670 = vmatprep.subr.mxu0 0.0
        %671 = vmatpush1.msra.mxu0 0.0
        %672 = vmatprep.subr.mxu0 0.0
        %673 = vmatpush1.msra.mxu0 0.0
        %674 = vmatprep.subr.mxu0 0.0
        %675 = vmatpush1.msra.mxu0 0.0
        %676 = vmatprep.subr.mxu0 0.0
        %677 = vmatpush1.msra.mxu0 0.0
        %678 = vmatprep.subr.mxu0 0.0
        %679 = vmatpush1.msra.mxu0 0.0
        %680 = vmatprep.subr.mxu0 0.0
        %681 = vmatpush1.msra.mxu0 0.0
        %682 = vmatprep.subr.mxu0 0.0
        %683 = vmatpush1.msra.mxu0 0.0
        %684 = vmatprep.subr.mxu0 0.0
        %685 = vmatpush1.msra.mxu0 0.0
        %686 = vmatprep.subr.mxu0 0.0
        %687 = vmatpush1.msra.mxu0 0.0
        %688 = vmatprep.subr.mxu0 0.0
        %689 = vmatpush1.msra.mxu0 0.0
        %690 = vmatprep.subr.mxu0 0.0
        %691 = vmatpush1.msra.mxu0 0.0
        %692 = vmatprep.subr.mxu0 0.0
        %693 = vmatpush1.msra.mxu0 0.0
        %694 = vmatprep.subr.mxu0 0.0
        %695 = vmatpush1.msra.mxu0 0.0
        %696 = vmatprep.subr.mxu0 0.0
        %697 = vmatpush1.msra.mxu0 0.0
        %698 = vmatprep.subr.mxu0 0.0
        %699 = vmatpush1.msra.mxu0 0.0
        %700 = vmatprep.subr.mxu0 0.0
        %701 = vmatpush1.msra.mxu0 0.0
        %702 = vmatprep.subr.mxu0 0.0
        %703 = vmatpush1.msra.mxu0 0.0
        %704 = vmatprep.subr.mxu0 0.0
        %705 = vmatpush1.msra.mxu0 0.0
        %706 = vmatprep.subr.mxu0 0.0
        %707 = vmatpush1.msra.mxu0 0.0
        %708 = vmatprep.subr.mxu0 0.0
        %709 = vmatpush1.msra.mxu0 0.0
        %710 = vmatprep.subr.mxu0 0.0
        %711 = vmatpush1.msra.mxu0 0.0
        %712 = vmatprep.subr.mxu0 0.0
        %713 = vmatpush1.msra.mxu0 0.0
        %714 = vmatprep.subr.mxu0 0.0
        %715 = vmatpush1.msra.mxu0 0.0
        %716 = vmatprep.subr.mxu0 0.0
        %717 = vmatpush1.msra.mxu0 0.0
        %718 = vmatprep.mubr.f32.mxu0 0.0
        %719 = vmatmul.mubr.f32.gmra.mrb[0].mxu0 %v572
        %v720 = vpop.f32.mrb[0].mxu0
        %v721 = vadd.f32 0.0, %v720
        %v722 = vpop.f32.mrb[0].mxu0
        %723 = vmatprep.mubr.f32.mxu0 0.0
        %724 = vmatmul.mubr.f32.gmra.mrb[0].mxu0 %v575
        %v725 = vpop.f32.mrb[0].mxu0
        %v726 = vadd.f32 0.0, %v725
        %v727 = vpop.f32.mrb[0].mxu0
        %728 = vdwg.mxu0
        %v729 = vld [vmem:[%s6] sm:$0xff]
        %v730 = vld [vmem:[%s6 + $0x8] sm:$0xff]
        %v731 = vld [vmem:[%s7] sm:$0xff]
        %v732 = vld [vmem:[%s7 + $0x8] sm:$0xff]
        %734 = vset.pattern.permute.xlu0 0
        %735 = vperm.xlu0 %734, %v731
        %v736 = vpop.permute.xlu0 %735
        %739 = vset.pattern.permute.xlu0 0
        %740 = vperm.xlu0 %739, %v732
        %v741 = vpop.permute.xlu0 %740
        %vm743 = vcmask 392192
        %v745 = vsel %vm743, %v729, 0
        %v748 = vsel %vm743, %v730, 0
        %750 = vmatprep.subr.mxu0 0.0
        %751 = vmatpush1.msra.mxu0 %v644
        %752 = vmatprep.subr.mxu0 0.0
        %753 = vmatpush1.msra.mxu0 %v649
        %754 = vmatprep.subr.mxu0 0.0
        %755 = vmatpush1.msra.mxu0 %v560
        %756 = vmatprep.subr.mxu0 0.0
        %757 = vmatpush1.msra.mxu0 %v565
        %758 = vmatprep.subr.mxu0 0.0
        %759 = vmatpush1.msra.mxu0 %v721
        %760 = vmatprep.subr.mxu0 0.0
        %761 = vmatpush1.msra.mxu0 %v726
        %762 = vmatprep.subr.mxu0 0.0
        %763 = vmatpush1.msra.mxu0 0.0
        %764 = vmatprep.subr.mxu0 0.0
        %765 = vmatpush1.msra.mxu0 0.0
        %766 = vmatprep.subr.mxu0 0.0
        %767 = vmatpush1.msra.mxu0 0.0
        %768 = vmatprep.subr.mxu0 0.0
        %769 = vmatpush1.msra.mxu0 0.0
        %770 = vmatprep.subr.mxu0 0.0
        %771 = vmatpush1.msra.mxu0 0.0
        %772 = vmatprep.subr.mxu0 0.0
        %773 = vmatpush1.msra.mxu0 0.0
        %774 = vmatprep.subr.mxu0 0.0
        %775 = vmatpush1.msra.mxu0 0.0
        %776 = vmatprep.subr.mxu0 0.0
        %777 = vmatpush1.msra.mxu0 0.0
        %778 = vmatprep.subr.mxu0 0.0
        %779 = vmatpush1.msra.mxu0 0.0
        %780 = vmatprep.subr.mxu0 0.0
        %781 = vmatpush1.msra.mxu0 0.0
        %782 = vmatprep.subr.mxu0 0.0
        %783 = vmatpush1.msra.mxu0 0.0
        %784 = vmatprep.subr.mxu0 0.0
        %785 = vmatpush1.msra.mxu0 0.0
        %786 = vmatprep.subr.mxu0 0.0
        %787 = vmatpush1.msra.mxu0 0.0
        %788 = vmatprep.subr.mxu0 0.0
        %789 = vmatpush1.msra.mxu0 0.0
        %790 = vmatprep.subr.mxu0 0.0
        %791 = vmatpush1.msra.mxu0 0.0
        %792 = vmatprep.subr.mxu0 0.0
        %793 = vmatpush1.msra.mxu0 0.0
        %794 = vmatprep.subr.mxu0 0.0
        %795 = vmatpush1.msra.mxu0 0.0
        %796 = vmatprep.subr.mxu0 0.0
        %797 = vmatpush1.msra.mxu0 0.0
        %798 = vmatprep.subr.mxu0 0.0
        %799 = vmatpush1.msra.mxu0 0.0
        %800 = vmatprep.subr.mxu0 0.0
        %801 = vmatpush1.msra.mxu0 0.0
        %802 = vmatprep.subr.mxu0 0.0
        %803 = vmatpush1.msra.mxu0 0.0
        %804 = vmatprep.subr.mxu0 0.0
        %805 = vmatpush1.msra.mxu0 0.0
        %806 = vmatprep.subr.mxu0 0.0
        %807 = vmatpush1.msra.mxu0 0.0
        %808 = vmatprep.subr.mxu0 0.0
        %809 = vmatpush1.msra.mxu0 0.0
        %810 = vmatprep.subr.mxu0 0.0
        %811 = vmatpush1.msra.mxu0 0.0
        %812 = vmatprep.subr.mxu0 0.0
        %813 = vmatpush1.msra.mxu0 0.0
        %814 = vmatprep.mubr.f32.mxu0 0.0
        %815 = vmatmul.mubr.f32.gmra.mrb[0].mxu0 %v745
        %v816 = vpop.f32.mrb[0].mxu0
        %v817 = vadd.f32 %v736, %v816
        %v818 = vpop.f32.mrb[0].mxu0
        %819 = vmatprep.mubr.f32.mxu0 0.0
        %820 = vmatmul.mubr.f32.gmra.mrb[0].mxu0 %v748
        %v821 = vpop.f32.mrb[0].mxu0
        %v822 = vadd.f32 %v741, %v821
        %v823 = vpop.f32.mrb[0].mxu0
        %824 = vdwg.mxu0
        %v825 = vmax.f32 %v817, 0.0
        %v826 = vmax.f32 %v822, 0.0
        %v827 = vld [vmem:[%s8] sm:$0xff]
        %v828 = vld [vmem:[%s8 + $0x8] sm:$0xff]
        %v829 = vld [vmem:[%s9] sm:$0xff]
        %v830 = vld [vmem:[%s9 + $0x8] sm:$0xff]
        %832 = vset.pattern.permute.xlu0 0
        %833 = vperm.xlu0 %832, %v829
        %v834 = vpop.permute.xlu0 %833
        %837 = vset.pattern.permute.xlu0 0
        %838 = vperm.xlu0 %837, %v830
        %v839 = vpop.permute.xlu0 %838
        %v842 = vsel %vm570, %v827, 0
        %v845 = vsel %vm570, %v828, 0
        %847 = vmatprep.subr.mxu0 0.0
        %848 = vmatpush1.msra.mxu0 %v825
        %849 = vmatprep.subr.mxu0 0.0
        %850 = vmatpush1.msra.mxu0 %v826
        %851 = vmatprep.subr.mxu0 0.0
        %852 = vmatpush1.msra.mxu0 0.0
        %853 = vmatprep.subr.mxu0 0.0
        %854 = vmatpush1.msra.mxu0 0.0
        %855 = vmatprep.subr.mxu0 0.0
        %856 = vmatpush1.msra.mxu0 0.0
        %857 = vmatprep.subr.mxu0 0.0
        %858 = vmatpush1.msra.mxu0 0.0
        %859 = vmatprep.subr.mxu0 0.0
        %860 = vmatpush1.msra.mxu0 0.0
        %861 = vmatprep.subr.mxu0 0.0
        %862 = vmatpush1.msra.mxu0 0.0
        %863 = vmatprep.subr.mxu0 0.0
        %864 = vmatpush1.msra.mxu0 0.0
        %865 = vmatprep.subr.mxu0 0.0
        %866 = vmatpush1.msra.mxu0 0.0
        %867 = vmatprep.subr.mxu0 0.0
        %868 = vmatpush1.msra.mxu0 0.0
        %869 = vmatprep.subr.mxu0 0.0
        %870 = vmatpush1.msra.mxu0 0.0
        %871 = vmatprep.subr.mxu0 0.0
        %872 = vmatpush1.msra.mxu0 0.0
        %873 = vmatprep.subr.mxu0 0.0
        %874 = vmatpush1.msra.mxu0 0.0
        %875 = vmatprep.subr.mxu0 0.0
        %876 = vmatpush1.msra.mxu0 0.0
        %877 = vmatprep.subr.mxu0 0.0
        %878 = vmatpush1.msra.mxu0 0.0
        %879 = vmatprep.subr.mxu0 0.0
        %880 = vmatpush1.msra.mxu0 0.0
        %881 = vmatprep.subr.mxu0 0.0
        %882 = vmatpush1.msra.mxu0 0.0
        %883 = vmatprep.subr.mxu0 0.0
        %884 = vmatpush1.msra.mxu0 0.0
        %885 = vmatprep.subr.mxu0 0.0
        %886 = vmatpush1.msra.mxu0 0.0
        %887 = vmatprep.subr.mxu0 0.0
        %888 = vmatpush1.msra.mxu0 0.0
        %889 = vmatprep.subr.mxu0 0.0
        %890 = vmatpush1.msra.mxu0 0.0
        %891 = vmatprep.subr.mxu0 0.0
        %892 = vmatpush1.msra.mxu0 0.0
        %893 = vmatprep.subr.mxu0 0.0
        %894 = vmatpush1.msra.mxu0 0.0
        %895 = vmatprep.subr.mxu0 0.0
        %896 = vmatpush1.msra.mxu0 0.0
        %897 = vmatprep.subr.mxu0 0.0
        %898 = vmatpush1.msra.mxu0 0.0
        %899 = vmatprep.subr.mxu0 0.0
        %900 = vmatpush1.msra.mxu0 0.0
        %901 = vmatprep.subr.mxu0 0.0
        %902 = vmatpush1.msra.mxu0 0.0
        %903 = vmatprep.subr.mxu0 0.0
        %904 = vmatpush1.msra.mxu0 0.0
        %905 = vmatprep.subr.mxu0 0.0
        %906 = vmatpush1.msra.mxu0 0.0
        %907 = vmatprep.subr.mxu0 0.0
        %908 = vmatpush1.msra.mxu0 0.0
        %909 = vmatprep.subr.mxu0 0.0
        %910 = vmatpush1.msra.mxu0 0.0
        %911 = vmatprep.mubr.f32.mxu0 0.0
        %912 = vmatmul.mubr.f32.gmra.mrb[0].mxu0 %v842
        %v913 = vpop.f32.mrb[0].mxu0
        %v914 = vadd.f32 %v834, %v913
        %v915 = vpop.f32.mrb[0].mxu0
        %916 = vmatprep.mubr.f32.mxu0 0.0
        %917 = vmatmul.mubr.f32.gmra.mrb[0].mxu0 %v845
        %v918 = vpop.f32.mrb[0].mxu0
        %v919 = vadd.f32 %v839, %v918
        %v920 = vpop.f32.mrb[0].mxu0
        %921 = vdwg.mxu0
        %v922 = vadd.f32 %v560, %v914
        %v923 = vadd.f32 %v565, %v919
        %v924 = vmul.f32 %v922, %v466
        %v925 = vmul.f32 %v923, %v466
        %s926 = scalar_lea.vmem %s4, 16
        %v927 = vld [vmem:[%s926] sm:$0xff]
        %v928 = vld [vmem:[%s926 + $0x8] sm:$0xff]
        %v930 = vsel %vm570, %v924, 0
        %v933 = vsel %vm570, %v925, 0
        %935 = vmatprep.subr.mxu0 0.0
        %936 = vmatpush1.msra.mxu0 %v927
        %937 = vmatprep.subr.mxu0 0.0
        %938 = vmatpush1.msra.mxu0 %v928
        %939 = vmatprep.subr.mxu0 0.0
        %940 = vmatpush1.msra.mxu0 0.0
        %941 = vmatprep.subr.mxu0 0.0
        %942 = vmatpush1.msra.mxu0 0.0
        %943 = vmatprep.subr.mxu0 0.0
        %944 = vmatpush1.msra.mxu0 0.0
        %945 = vmatprep.subr.mxu0 0.0
        %946 = vmatpush1.msra.mxu0 0.0
        %947 = vmatprep.subr.mxu0 0.0
        %948 = vmatpush1.msra.mxu0 0.0
        %949 = vmatprep.subr.mxu0 0.0
        %950 = vmatpush1.msra.mxu0 0.0
        %951 = vmatprep.subr.mxu0 0.0
        %952 = vmatpush1.msra.mxu0 0.0
        %953 = vmatprep.subr.mxu0 0.0
        %954 = vmatpush1.msra.mxu0 0.0
        %955 = vmatprep.subr.mxu0 0.0
        %956 = vmatpush1.msra.mxu0 0.0
        %957 = vmatprep.subr.mxu0 0.0
        %958 = vmatpush1.msra.mxu0 0.0
        %959 = vmatprep.subr.mxu0 0.0
        %960 = vmatpush1.msra.mxu0 0.0
        %961 = vmatprep.subr.mxu0 0.0
        %962 = vmatpush1.msra.mxu0 0.0
        %963 = vmatprep.subr.mxu0 0.0
        %964 = vmatpush1.msra.mxu0 0.0
        %965 = vmatprep.subr.mxu0 0.0
        %966 = vmatpush1.msra.mxu0 0.0
        %967 = vmatprep.subr.mxu0 0.0
        %968 = vmatpush1.msra.mxu0 0.0
        %969 = vmatprep.subr.mxu0 0.0
        %970 = vmatpush1.msra.mxu0 0.0
        %971 = vmatprep.subr.mxu0 0.0
        %972 = vmatpush1.msra.mxu0 0.0
        %973 = vmatprep.subr.mxu0 0.0
        %974 = vmatpush1.msra.mxu0 0.0
        %975 = vmatprep.subr.mxu0 0.0
        %976 = vmatpush1.msra.mxu0 0.0
        %977 = vmatprep.subr.mxu0 0.0
        %978 = vmatpush1.msra.mxu0 0.0
        %979 = vmatprep.subr.mxu0 0.0
        %980 = vmatpush1.msra.mxu0 0.0
        %981 = vmatprep.subr.mxu0 0.0
        %982 = vmatpush1.msra.mxu0 0.0
        %983 = vmatprep.subr.mxu0 0.0
        %984 = vmatpush1.msra.mxu0 0.0
        %985 = vmatprep.subr.mxu0 0.0
        %986 = vmatpush1.msra.mxu0 0.0
        %987 = vmatprep.subr.mxu0 0.0
        %988 = vmatpush1.msra.mxu0 0.0
        %989 = vmatprep.subr.mxu0 0.0
        %990 = vmatpush1.msra.mxu0 0.0
        %991 = vmatprep.subr.mxu0 0.0
        %992 = vmatpush1.msra.mxu0 0.0
        %993 = vmatprep.subr.mxu0 0.0
        %994 = vmatpush1.msra.mxu0 0.0
        %995 = vmatprep.subr.mxu0 0.0
        %996 = vmatpush1.msra.mxu0 0.0
        %997 = vmatprep.subr.mxu0 0.0
        %998 = vmatpush1.msra.mxu0 0.0
        %999 = vmatprep.mubr.f32.mxu0 0.0
        %1000 = vmatmul.mubr.f32.gmra.mrb[0].mxu0 %v930
        %v1001 = vpop.f32.mrb[0].mxu0
        %v1002 = vadd.f32 0.0, %v1001
        %v1003 = vpop.f32.mrb[0].mxu0
        %1004 = vmatprep.mubr.f32.mxu0 0.0
        %1005 = vmatmul.mubr.f32.gmra.mrb[0].mxu0 %v933
        %v1006 = vpop.f32.mrb[0].mxu0
        %v1007 = vadd.f32 0.0, %v1006
        %v1008 = vpop.f32.mrb[0].mxu0
        %1009 = vdwg.mxu0
        %s1010 = scalar_lea.vmem %s5, 16
        %v1011 = vld [vmem:[%s1010] sm:$0xff]
        %v1012 = vld [vmem:[%s1010 + $0x8] sm:$0xff]
        %1013 = vmatprep.subr.mxu0 0.0
        %1014 = vmatpush1.msra.mxu0 %v1011
        %1015 = vmatprep.subr.mxu0 0.0
        %1016 = vmatpush1.msra.mxu0 %v1012
        %1017 = vmatprep.subr.mxu0 0.0
        %1018 = vmatpush1.msra.mxu0 0.0
        %1019 = vmatprep.subr.mxu0 0.0
        %1020 = vmatpush1.msra.mxu0 0.0
        %1021 = vmatprep.subr.mxu0 0.0
        %1022 = vmatpush1.msra.mxu0 0.0
        %1023 = vmatprep.subr.mxu0 0.0
        %1024 = vmatpush1.msra.mxu0 0.0
        %1025 = vmatprep.subr.mxu0 0.0
        %1026 = vmatpush1.msra.mxu0 0.0
        %1027 = vmatprep.subr.mxu0 0.0
        %1028 = vmatpush1.msra.mxu0 0.0
        %1029 = vmatprep.subr.mxu0 0.0
        %1030 = vmatpush1.msra.mxu0 0.0
        %1031 = vmatprep.subr.mxu0 0.0
        %1032 = vmatpush1.msra.mxu0 0.0
        %1033 = vmatprep.subr.mxu0 0.0
        %1034 = vmatpush1.msra.mxu0 0.0
        %1035 = vmatprep.subr.mxu0 0.0
        %1036 = vmatpush1.msra.mxu0 0.0
        %1037 = vmatprep.subr.mxu0 0.0
        %1038 = vmatpush1.msra.mxu0 0.0
        %1039 = vmatprep.subr.mxu0 0.0
        %1040 = vmatpush1.msra.mxu0 0.0
        %1041 = vmatprep.subr.mxu0 0.0
        %1042 = vmatpush1.msra.mxu0 0.0
        %1043 = vmatprep.subr.mxu0 0.0
        %1044 = vmatpush1.msra.mxu0 0.0
        %1045 = vmatprep.subr.mxu0 0.0
        %1046 = vmatpush1.msra.mxu0 0.0
        %1047 = vmatprep.subr.mxu0 0.0
        %1048 = vmatpush1.msra.mxu0 0.0
        %1049 = vmatprep.subr.mxu0 0.0
        %1050 = vmatpush1.msra.mxu0 0.0
        %1051 = vmatprep.subr.mxu0 0.0
        %1052 = vmatpush1.msra.mxu0 0.0
        %1053 = vmatprep.subr.mxu0 0.0
        %1054 = vmatpush1.msra.mxu0 0.0
        %1055 = vmatprep.subr.mxu0 0.0
        %1056 = vmatpush1.msra.mxu0 0.0
        %1057 = vmatprep.subr.mxu0 0.0
        %1058 = vmatpush1.msra.mxu0 0.0
        %1059 = vmatprep.subr.mxu0 0.0
        %1060 = vmatpush1.msra.mxu0 0.0
        %1061 = vmatprep.subr.mxu0 0.0
        %1062 = vmatpush1.msra.mxu0 0.0
        %1063 = vmatprep.subr.mxu0 0.0
        %1064 = vmatpush1.msra.mxu0 0.0
        %1065 = vmatprep.subr.mxu0 0.0
        %1066 = vmatpush1.msra.mxu0 0.0
        %1067 = vmatprep.subr.mxu0 0.0
        %1068 = vmatpush1.msra.mxu0 0.0
        %1069 = vmatprep.subr.mxu0 0.0
        %1070 = vmatpush1.msra.mxu0 0.0
        %1071 = vmatprep.subr.mxu0 0.0
        %1072 = vmatpush1.msra.mxu0 0.0
        %1073 = vmatprep.subr.mxu0 0.0
        %1074 = vmatpush1.msra.mxu0 0.0
        %1075 = vmatprep.subr.mxu0 0.0
        %1076 = vmatpush1.msra.mxu0 0.0
        %1077 = vmatprep.mubr.f32.mxu0 0.0
        %1078 = vmatmul.mubr.f32.gmra.mrb[0].mxu0 %v930
        %v1079 = vpop.f32.mrb[0].mxu0
        %v1080 = vadd.f32 0.0, %v1079
        %v1081 = vpop.f32.mrb[0].mxu0
        %1082 = vmatprep.mubr.f32.mxu0 0.0
        %1083 = vmatmul.mubr.f32.gmra.mrb[0].mxu0 %v933
        %v1084 = vpop.f32.mrb[0].mxu0
        %v1085 = vadd.f32 0.0, %v1084
        %v1086 = vpop.f32.mrb[0].mxu0
        %1087 = vdwg.mxu0
        %s1088 = scalar_lea.vmem %s6, 16
        %v1089 = vld [vmem:[%s1088] sm:$0xff]
        %v1090 = vld [vmem:[%s1088 + $0x8] sm:$0xff]
        %s1091 = scalar_lea.vmem %s7, 16
        %v1092 = vld [vmem:[%s1091] sm:$0xff]
        %v1093 = vld [vmem:[%s1091 + $0x8] sm:$0xff]
        %1095 = vset.pattern.permute.xlu0 0
        %1096 = vperm.xlu0 %1095, %v1092
        %v1097 = vpop.permute.xlu0 %1096
        %1100 = vset.pattern.permute.xlu0 0
        %1101 = vperm.xlu0 %1100, %v1093
        %v1102 = vpop.permute.xlu0 %1101
        %v1105 = vsel %vm743, %v1089, 0
        %v1108 = vsel %vm743, %v1090, 0
        %1110 = vmatprep.subr.mxu0 0.0
        %1111 = vmatpush1.msra.mxu0 %v1002
        %1112 = vmatprep.subr.mxu0 0.0
        %1113 = vmatpush1.msra.mxu0 %v1007
        %1114 = vmatprep.subr.mxu0 0.0
        %1115 = vmatpush1.msra.mxu0 %v924
        %1116 = vmatprep.subr.mxu0 0.0
        %1117 = vmatpush1.msra.mxu0 %v925
        %1118 = vmatprep.subr.mxu0 0.0
        %1119 = vmatpush1.msra.mxu0 %v1080
        %1120 = vmatprep.subr.mxu0 0.0
        %1121 = vmatpush1.msra.mxu0 %v1085
        %1122 = vmatprep.subr.mxu0 0.0
        %1123 = vmatpush1.msra.mxu0 0.0
        %1124 = vmatprep.subr.mxu0 0.0
        %1125 = vmatpush1.msra.mxu0 0.0
        %1126 = vmatprep.subr.mxu0 0.0
        %1127 = vmatpush1.msra.mxu0 0.0
        %1128 = vmatprep.subr.mxu0 0.0
        %1129 = vmatpush1.msra.mxu0 0.0
        %1130 = vmatprep.subr.mxu0 0.0
        %1131 = vmatpush1.msra.mxu0 0.0
        %1132 = vmatprep.subr.mxu0 0.0
        %1133 = vmatpush1.msra.mxu0 0.0
        %1134 = vmatprep.subr.mxu0 0.0
        %1135 = vmatpush1.msra.mxu0 0.0
        %1136 = vmatprep.subr.mxu0 0.0
        %1137 = vmatpush1.msra.mxu0 0.0
        %1138 = vmatprep.subr.mxu0 0.0
        %1139 = vmatpush1.msra.mxu0 0.0
        %1140 = vmatprep.subr.mxu0 0.0
        %1141 = vmatpush1.msra.mxu0 0.0
        %1142 = vmatprep.subr.mxu0 0.0
        %1143 = vmatpush1.msra.mxu0 0.0
        %1144 = vmatprep.subr.mxu0 0.0
        %1145 = vmatpush1.msra.mxu0 0.0
        %1146 = vmatprep.subr.mxu0 0.0
        %1147 = vmatpush1.msra.mxu0 0.0
        %1148 = vmatprep.subr.mxu0 0.0
        %1149 = vmatpush1.msra.mxu0 0.0
        %1150 = vmatprep.subr.mxu0 0.0
        %1151 = vmatpush1.msra.mxu0 0.0
        %1152 = vmatprep.subr.mxu0 0.0
        %1153 = vmatpush1.msra.mxu0 0.0
        %1154 = vmatprep.subr.mxu0 0.0
        %1155 = vmatpush1.msra.mxu0 0.0
        %1156 = vmatprep.subr.mxu0 0.0
        %1157 = vmatpush1.msra.mxu0 0.0
        %1158 = vmatprep.subr.mxu0 0.0
        %1159 = vmatpush1.msra.mxu0 0.0
        %1160 = vmatprep.subr.mxu0 0.0
        %1161 = vmatpush1.msra.mxu0 0.0
        %1162 = vmatprep.subr.mxu0 0.0
        %1163 = vmatpush1.msra.mxu0 0.0
        %1164 = vmatprep.subr.mxu0 0.0
        %1165 = vmatpush1.msra.mxu0 0.0
        %1166 = vmatprep.subr.mxu0 0.0
        %1167 = vmatpush1.msra.mxu0 0.0
        %1168 = vmatprep.subr.mxu0 0.0
        %1169 = vmatpush1.msra.mxu0 0.0
        %1170 = vmatprep.subr.mxu0 0.0
        %1171 = vmatpush1.msra.mxu0 0.0
        %1172 = vmatprep.subr.mxu0 0.0
        %1173 = vmatpush1.msra.mxu0 0.0
        %1174 = vmatprep.mubr.f32.mxu0 0.0
        %1175 = vmatmul.mubr.f32.gmra.mrb[0].mxu0 %v1105
        %v1176 = vpop.f32.mrb[0].mxu0
        %v1177 = vadd.f32 %v1097, %v1176
        %v1178 = vpop.f32.mrb[0].mxu0
        %1179 = vmatprep.mubr.f32.mxu0 0.0
        %1180 = vmatmul.mubr.f32.gmra.mrb[0].mxu0 %v1108
        %v1181 = vpop.f32.mrb[0].mxu0
        %v1182 = vadd.f32 %v1102, %v1181
        %v1183 = vpop.f32.mrb[0].mxu0
        %1184 = vdwg.mxu0
        %v1185 = vmax.f32 %v1177, 0.0
        %v1186 = vmax.f32 %v1182, 0.0
        %s1187 = scalar_lea.vmem %s8, 16
        %v1188 = vld [vmem:[%s1187] sm:$0xff]
        %v1189 = vld [vmem:[%s1187 + $0x8] sm:$0xff]
        %s1190 = scalar_lea.vmem %s9, 16
        %v1191 = vld [vmem:[%s1190] sm:$0xff]
        %v1192 = vld [vmem:[%s1190 + $0x8] sm:$0xff]
        %1194 = vset.pattern.permute.xlu0 0
        %1195 = vperm.xlu0 %1194, %v1191
        %v1196 = vpop.permute.xlu0 %1195
        %1199 = vset.pattern.permute.xlu0 0
        %1200 = vperm.xlu0 %1199, %v1192
        %v1201 = vpop.permute.xlu0 %1200
        %v1204 = vsel %vm570, %v1188, 0
        %v1207 = vsel %vm570, %v1189, 0
        %1209 = vmatprep.subr.mxu0 0.0
        %1210 = vmatpush1.msra.mxu0 %v1185
        %1211 = vmatprep.subr.mxu0 0.0
        %1212 = vmatpush1.msra.mxu0 %v1186
        %1213 = vmatprep.subr.mxu0 0.0
        %1214 = vmatpush1.msra.mxu0 0.0
        %1215 = vmatprep.subr.mxu0 0.0
        %1216 = vmatpush1.msra.mxu0 0.0
        %1217 = vmatprep.subr.mxu0 0.0
        %1218 = vmatpush1.msra.mxu0 0.0
        %1219 = vmatprep.subr.mxu0 0.0
        %1220 = vmatpush1.msra.mxu0 0.0
        %1221 = vmatprep.subr.mxu0 0.0
        %1222 = vmatpush1.msra.mxu0 0.0
        %1223 = vmatprep.subr.mxu0 0.0
        %1224 = vmatpush1.msra.mxu0 0.0
        %1225 = vmatprep.subr.mxu0 0.0
        %1226 = vmatpush1.msra.mxu0 0.0
        %1227 = vmatprep.subr.mxu0 0.0
        %1228 = vmatpush1.msra.mxu0 0.0
        %1229 = vmatprep.subr.mxu0 0.0
        %1230 = vmatpush1.msra.mxu0 0.0
        %1231 = vmatprep.subr.mxu0 0.0
        %1232 = vmatpush1.msra.mxu0 0.0
        %1233 = vmatprep.subr.mxu0 0.0
        %1234 = vmatpush1.msra.mxu0 0.0
        %1235 = vmatprep.subr.mxu0 0.0
        %1236 = vmatpush1.msra.mxu0 0.0
        %1237 = vmatprep.subr.mxu0 0.0
        %1238 = vmatpush1.msra.mxu0 0.0
        %1239 = vmatprep.subr.mxu0 0.0
        %1240 = vmatpush1.msra.mxu0 0.0
        %1241 = vmatprep.subr.mxu0 0.0
        %1242 = vmatpush1.msra.mxu0 0.0
        %1243 = vmatprep.subr.mxu0 0.0
        %1244 = vmatpush1.msra.mxu0 0.0
        %1245 = vmatprep.subr.mxu0 0.0
        %1246 = vmatpush1.msra.mxu0 0.0
        %1247 = vmatprep.subr.mxu0 0.0
        %1248 = vmatpush1.msra.mxu0 0.0
        %1249 = vmatprep.subr.mxu0 0.0
        %1250 = vmatpush1.msra.mxu0 0.0
        %1251 = vmatprep.subr.mxu0 0.0
        %1252 = vmatpush1.msra.mxu0 0.0
        %1253 = vmatprep.subr.mxu0 0.0
        %1254 = vmatpush1.msra.mxu0 0.0
        %1255 = vmatprep.subr.mxu0 0.0
        %1256 = vmatpush1.msra.mxu0 0.0
        %1257 = vmatprep.subr.mxu0 0.0
        %1258 = vmatpush1.msra.mxu0 0.0
        %1259 = vmatprep.subr.mxu0 0.0
        %1260 = vmatpush1.msra.mxu0 0.0
        %1261 = vmatprep.subr.mxu0 0.0
        %1262 = vmatpush1.msra.mxu0 0.0
        %1263 = vmatprep.subr.mxu0 0.0
        %1264 = vmatpush1.msra.mxu0 0.0
        %1265 = vmatprep.subr.mxu0 0.0
        %1266 = vmatpush1.msra.mxu0 0.0
        %1267 = vmatprep.subr.mxu0 0.0
        %1268 = vmatpush1.msra.mxu0 0.0
        %1269 = vmatprep.subr.mxu0 0.0
        %1270 = vmatpush1.msra.mxu0 0.0
        %1271 = vmatprep.subr.mxu0 0.0
        %1272 = vmatpush1.msra.mxu0 0.0
        %1273 = vmatprep.mubr.f32.mxu0 0.0
        %1274 = vmatmul.mubr.f32.gmra.mrb[0].mxu0 %v1204
        %v1275 = vpop.f32.mrb[0].mxu0
        %v1276 = vadd.f32 %v1196, %v1275
        %v1277 = vpop.f32.mrb[0].mxu0
        %1278 = vmatprep.mubr.f32.mxu0 0.0
        %1279 = vmatmul.mubr.f32.gmra.mrb[0].mxu0 %v1207
        %v1280 = vpop.f32.mrb[0].mxu0
        %v1281 = vadd.f32 %v1201, %v1280
        %v1282 = vpop.f32.mrb[0].mxu0
        %1283 = vdwg.mxu0
        %v1284 = vadd.f32 %v924, %v1276
        %v1285 = vadd.f32 %v925, %v1281
        %v1286 = vmul.f32 %v1284, %v466
        %v1287 = vmul.f32 %v1285, %v466
        %s1288 = scalar_lea.vmem %s4, 32
        %v1289 = vld [vmem:[%s1288] sm:$0xff]
        %v1290 = vld [vmem:[%s1288 + $0x8] sm:$0xff]
        %v1292 = vsel %vm570, %v1286, 0
        %v1295 = vsel %vm570, %v1287, 0
        %1297 = vmatprep.subr.mxu0 0.0
        %1298 = vmatpush1.msra.mxu0 %v1289
        %1299 = vmatprep.subr.mxu0 0.0
        %1300 = vmatpush1.msra.mxu0 %v1290
        %1301 = vmatprep.subr.mxu0 0.0
        %1302 = vmatpush1.msra.mxu0 0.0
        %1303 = vmatprep.subr.mxu0 0.0
        %1304 = vmatpush1.msra.mxu0 0.0
        %1305 = vmatprep.subr.mxu0 0.0
        %1306 = vmatpush1.msra.mxu0 0.0
        %1307 = vmatprep.subr.mxu0 0.0
        %1308 = vmatpush1.msra.mxu0 0.0
        %1309 = vmatprep.subr.mxu0 0.0
        %1310 = vmatpush1.msra.mxu0 0.0
        %1311 = vmatprep.subr.mxu0 0.0
        %1312 = vmatpush1.msra.mxu0 0.0
        %1313 = vmatprep.subr.mxu0 0.0
        %1314 = vmatpush1.msra.mxu0 0.0
        %1315 = vmatprep.subr.mxu0 0.0
        %1316 = vmatpush1.msra.mxu0 0.0
        %1317 = vmatprep.subr.mxu0 0.0
        %1318 = vmatpush1.msra.mxu0 0.0
        %1319 = vmatprep.subr.mxu0 0.0
        %1320 = vmatpush1.msra.mxu0 0.0
        %1321 = vmatprep.subr.mxu0 0.0
        %1322 = vmatpush1.msra.mxu0 0.0
        %1323 = vmatprep.subr.mxu0 0.0
        %1324 = vmatpush1.msra.mxu0 0.0
        %1325 = vmatprep.subr.mxu0 0.0
        %1326 = vmatpush1.msra.mxu0 0.0
        %1327 = vmatprep.subr.mxu0 0.0
        %1328 = vmatpush1.msra.mxu0 0.0
        %1329 = vmatprep.subr.mxu0 0.0
        %1330 = vmatpush1.msra.mxu0 0.0
        %1331 = vmatprep.subr.mxu0 0.0
        %1332 = vmatpush1.msra.mxu0 0.0
        %1333 = vmatprep.subr.mxu0 0.0
        %1334 = vmatpush1.msra.mxu0 0.0
        %1335 = vmatprep.subr.mxu0 0.0
        %1336 = vmatpush1.msra.mxu0 0.0
        %1337 = vmatprep.subr.mxu0 0.0
        %1338 = vmatpush1.msra.mxu0 0.0
        %1339 = vmatprep.subr.mxu0 0.0
        %1340 = vmatpush1.msra.mxu0 0.0
        %1341 = vmatprep.subr.mxu0 0.0
        %1342 = vmatpush1.msra.mxu0 0.0
        %1343 = vmatprep.subr.mxu0 0.0
        %1344 = vmatpush1.msra.mxu0 0.0
        %1345 = vmatprep.subr.mxu0 0.0
        %1346 = vmatpush1.msra.mxu0 0.0
        %1347 = vmatprep.subr.mxu0 0.0
        %1348 = vmatpush1.msra.mxu0 0.0
        %1349 = vmatprep.subr.mxu0 0.0
        %1350 = vmatpush1.msra.mxu0 0.0
        %1351 = vmatprep.subr.mxu0 0.0
        %1352 = vmatpush1.msra.mxu0 0.0
        %1353 = vmatprep.subr.mxu0 0.0
        %1354 = vmatpush1.msra.mxu0 0.0
        %1355 = vmatprep.subr.mxu0 0.0
        %1356 = vmatpush1.msra.mxu0 0.0
        %1357 = vmatprep.subr.mxu0 0.0
        %1358 = vmatpush1.msra.mxu0 0.0
        %1359 = vmatprep.subr.mxu0 0.0
        %1360 = vmatpush1.msra.mxu0 0.0
        %1361 = vmatprep.mubr.f32.mxu0 0.0
        %1362 = vmatmul.mubr.f32.gmra.mrb[0].mxu0 %v1292
        %v1363 = vpop.f32.mrb[0].mxu0
        %v1364 = vadd.f32 0.0, %v1363
        %v1365 = vpop.f32.mrb[0].mxu0
        %1366 = vmatprep.mubr.f32.mxu0 0.0
        %1367 = vmatmul.mubr.f32.gmra.mrb[0].mxu0 %v1295
        %v1368 = vpop.f32.mrb[0].mxu0
        %v1369 = vadd.f32 0.0, %v1368
        %v1370 = vpop.f32.mrb[0].mxu0
        %1371 = vdwg.mxu0
        %s1372 = scalar_lea.vmem %s5, 32
        %v1373 = vld [vmem:[%s1372] sm:$0xff]
        %v1374 = vld [vmem:[%s1372 + $0x8] sm:$0xff]
        %1375 = vmatprep.subr.mxu0 0.0
        %1376 = vmatpush1.msra.mxu0 %v1373
        %1377 = vmatprep.subr.mxu0 0.0
        %1378 = vmatpush1.msra.mxu0 %v1374
        %1379 = vmatprep.subr.mxu0 0.0
        %1380 = vmatpush1.msra.mxu0 0.0
        %1381 = vmatprep.subr.mxu0 0.0
        %1382 = vmatpush1.msra.mxu0 0.0
        %1383 = vmatprep.subr.mxu0 0.0
        %1384 = vmatpush1.msra.mxu0 0.0
        %1385 = vmatprep.subr.mxu0 0.0
        %1386 = vmatpush1.msra.mxu0 0.0
        %1387 = vmatprep.subr.mxu0 0.0
        %1388 = vmatpush1.msra.mxu0 0.0
        %1389 = vmatprep.subr.mxu0 0.0
        %1390 = vmatpush1.msra.mxu0 0.0
        %1391 = vmatprep.subr.mxu0 0.0
        %1392 = vmatpush1.msra.mxu0 0.0
        %1393 = vmatprep.subr.mxu0 0.0
        %1394 = vmatpush1.msra.mxu0 0.0
        %1395 = vmatprep.subr.mxu0 0.0
        %1396 = vmatpush1.msra.mxu0 0.0
        %1397 = vmatprep.subr.mxu0 0.0
        %1398 = vmatpush1.msra.mxu0 0.0
        %1399 = vmatprep.subr.mxu0 0.0
        %1400 = vmatpush1.msra.mxu0 0.0
        %1401 = vmatprep.subr.mxu0 0.0
        %1402 = vmatpush1.msra.mxu0 0.0
        %1403 = vmatprep.subr.mxu0 0.0
        %1404 = vmatpush1.msra.mxu0 0.0
        %1405 = vmatprep.subr.mxu0 0.0
        %1406 = vmatpush1.msra.mxu0 0.0
        %1407 = vmatprep.subr.mxu0 0.0
        %1408 = vmatpush1.msra.mxu0 0.0
        %1409 = vmatprep.subr.mxu0 0.0
        %1410 = vmatpush1.msra.mxu0 0.0
        %1411 = vmatprep.subr.mxu0 0.0
        %1412 = vmatpush1.msra.mxu0 0.0
        %1413 = vmatprep.subr.mxu0 0.0
        %1414 = vmatpush1.msra.mxu0 0.0
        %1415 = vmatprep.subr.mxu0 0.0
        %1416 = vmatpush1.msra.mxu0 0.0
        %1417 = vmatprep.subr.mxu0 0.0
        %1418 = vmatpush1.msra.mxu0 0.0
        %1419 = vmatprep.subr.mxu0 0.0
        %1420 = vmatpush1.msra.mxu0 0.0
        %1421 = vmatprep.subr.mxu0 0.0
        %1422 = vmatpush1.msra.mxu0 0.0
        %1423 = vmatprep.subr.mxu0 0.0
        %1424 = vmatpush1.msra.mxu0 0.0
        %1425 = vmatprep.subr.mxu0 0.0
        %1426 = vmatpush1.msra.mxu0 0.0
        %1427 = vmatprep.subr.mxu0 0.0
        %1428 = vmatpush1.msra.mxu0 0.0
        %1429 = vmatprep.subr.mxu0 0.0
        %1430 = vmatpush1.msra.mxu0 0.0
        %1431 = vmatprep.subr.mxu0 0.0
        %1432 = vmatpush1.msra.mxu0 0.0
        %1433 = vmatprep.subr.mxu0 0.0
        %1434 = vmatpush1.msra.mxu0 0.0
        %1435 = vmatprep.subr.mxu0 0.0
        %1436 = vmatpush1.msra.mxu0 0.0
        %1437 = vmatprep.subr.mxu0 0.0
        %1438 = vmatpush1.msra.mxu0 0.0
        %1439 = vmatprep.mubr.f32.mxu0 0.0
        %1440 = vmatmul.mubr.f32.gmra.mrb[0].mxu0 %v1292
        %v1441 = vpop.f32.mrb[0].mxu0
        %v1442 = vadd.f32 0.0, %v1441
        %v1443 = vpop.f32.mrb[0].mxu0
        %1444 = vmatprep.mubr.f32.mxu0 0.0
        %1445 = vmatmul.mubr.f32.gmra.mrb[0].mxu0 %v1295
        %v1446 = vpop.f32.mrb[0].mxu0
        %v1447 = vadd.f32 0.0, %v1446
        %v1448 = vpop.f32.mrb[0].mxu0
        %1449 = vdwg.mxu0
        %s1450 = scalar_lea.vmem %s6, 32
        %v1451 = vld [vmem:[%s1450] sm:$0xff]
        %v1452 = vld [vmem:[%s1450 + $0x8] sm:$0xff]
        %s1453 = scalar_lea.vmem %s7, 32
        %v1454 = vld [vmem:[%s1453] sm:$0xff]
        %v1455 = vld [vmem:[%s1453 + $0x8] sm:$0xff]
        %1457 = vset.pattern.permute.xlu0 0
        %1458 = vperm.xlu0 %1457, %v1454
        %v1459 = vpop.permute.xlu0 %1458
        %1462 = vset.pattern.permute.xlu0 0
        %1463 = vperm.xlu0 %1462, %v1455
        %v1464 = vpop.permute.xlu0 %1463
        %v1467 = vsel %vm743, %v1451, 0
        %v1470 = vsel %vm743, %v1452, 0
        %1472 = vmatprep.subr.mxu0 0.0
        %1473 = vmatpush1.msra.mxu0 %v1364
        %1474 = vmatprep.subr.mxu0 0.0
        %1475 = vmatpush1.msra.mxu0 %v1369
        %1476 = vmatprep.subr.mxu0 0.0
        %1477 = vmatpush1.msra.mxu0 %v1286
        %1478 = vmatprep.subr.mxu0 0.0
        %1479 = vmatpush1.msra.mxu0 %v1287
        %1480 = vmatprep.subr.mxu0 0.0
        %1481 = vmatpush1.msra.mxu0 %v1442
        %1482 = vmatprep.subr.mxu0 0.0
        %1483 = vmatpush1.msra.mxu0 %v1447
        %1484 = vmatprep.subr.mxu0 0.0
        %1485 = vmatpush1.msra.mxu0 0.0
        %1486 = vmatprep.subr.mxu0 0.0
        %1487 = vmatpush1.msra.mxu0 0.0
        %1488 = vmatprep.subr.mxu0 0.0
        %1489 = vmatpush1.msra.mxu0 0.0
        %1490 = vmatprep.subr.mxu0 0.0
        %1491 = vmatpush1.msra.mxu0 0.0
        %1492 = vmatprep.subr.mxu0 0.0
        %1493 = vmatpush1.msra.mxu0 0.0
        %1494 = vmatprep.subr.mxu0 0.0
        %1495 = vmatpush1.msra.mxu0 0.0
        %1496 = vmatprep.subr.mxu0 0.0
        %1497 = vmatpush1.msra.mxu0 0.0
        %1498 = vmatprep.subr.mxu0 0.0
        %1499 = vmatpush1.msra.mxu0 0.0
        %1500 = vmatprep.subr.mxu0 0.0
        %1501 = vmatpush1.msra.mxu0 0.0
        %1502 = vmatprep.subr.mxu0 0.0
        %1503 = vmatpush1.msra.mxu0 0.0
        %1504 = vmatprep.subr.mxu0 0.0
        %1505 = vmatpush1.msra.mxu0 0.0
        %1506 = vmatprep.subr.mxu0 0.0
        %1507 = vmatpush1.msra.mxu0 0.0
        %1508 = vmatprep.subr.mxu0 0.0
        %1509 = vmatpush1.msra.mxu0 0.0
        %1510 = vmatprep.subr.mxu0 0.0
        %1511 = vmatpush1.msra.mxu0 0.0
        %1512 = vmatprep.subr.mxu0 0.0
        %1513 = vmatpush1.msra.mxu0 0.0
        %1514 = vmatprep.subr.mxu0 0.0
        %1515 = vmatpush1.msra.mxu0 0.0
        %1516 = vmatprep.subr.mxu0 0.0
        %1517 = vmatpush1.msra.mxu0 0.0
        %1518 = vmatprep.subr.mxu0 0.0
        %1519 = vmatpush1.msra.mxu0 0.0
        %1520 = vmatprep.subr.mxu0 0.0
        %1521 = vmatpush1.msra.mxu0 0.0
        %1522 = vmatprep.subr.mxu0 0.0
        %1523 = vmatpush1.msra.mxu0 0.0
        %1524 = vmatprep.subr.mxu0 0.0
        %1525 = vmatpush1.msra.mxu0 0.0
        %1526 = vmatprep.subr.mxu0 0.0
        %1527 = vmatpush1.msra.mxu0 0.0
        %1528 = vmatprep.subr.mxu0 0.0
        %1529 = vmatpush1.msra.mxu0 0.0
        %1530 = vmatprep.subr.mxu0 0.0
        %1531 = vmatpush1.msra.mxu0 0.0
        %1532 = vmatprep.subr.mxu0 0.0
        %1533 = vmatpush1.msra.mxu0 0.0
        %1534 = vmatprep.subr.mxu0 0.0
        %1535 = vmatpush1.msra.mxu0 0.0
        %1536 = vmatprep.mubr.f32.mxu0 0.0
        %1537 = vmatmul.mubr.f32.gmra.mrb[0].mxu0 %v1467
        %v1538 = vpop.f32.mrb[0].mxu0
        %v1539 = vadd.f32 %v1459, %v1538
        %v1540 = vpop.f32.mrb[0].mxu0
        %1541 = vmatprep.mubr.f32.mxu0 0.0
        %1542 = vmatmul.mubr.f32.gmra.mrb[0].mxu0 %v1470
        %v1543 = vpop.f32.mrb[0].mxu0
        %v1544 = vadd.f32 %v1464, %v1543
        %v1545 = vpop.f32.mrb[0].mxu0
        %1546 = vdwg.mxu0
        %v1547 = vmax.f32 %v1539, 0.0
        %v1548 = vmax.f32 %v1544, 0.0
        %s1549 = scalar_lea.vmem %s8, 32
        %v1550 = vld [vmem:[%s1549] sm:$0xff]
        %v1551 = vld [vmem:[%s1549 + $0x8] sm:$0xff]
        %s1552 = scalar_lea.vmem %s9, 32
        %v1553 = vld [vmem:[%s1552] sm:$0xff]
        %v1554 = vld [vmem:[%s1552 + $0x8] sm:$0xff]
        %1556 = vset.pattern.permute.xlu0 0
        %1557 = vperm.xlu0 %1556, %v1553
        %v1558 = vpop.permute.xlu0 %1557
        %1561 = vset.pattern.permute.xlu0 0
        %1562 = vperm.xlu0 %1561, %v1554
        %v1563 = vpop.permute.xlu0 %1562
        %v1566 = vsel %vm570, %v1550, 0
        %v1569 = vsel %vm570, %v1551, 0
        %1571 = vmatprep.subr.mxu0 0.0
        %1572 = vmatpush1.msra.mxu0 %v1547
        %1573 = vmatprep.subr.mxu0 0.0
        %1574 = vmatpush1.msra.mxu0 %v1548
        %1575 = vmatprep.subr.mxu0 0.0
        %1576 = vmatpush1.msra.mxu0 0.0
        %1577 = vmatprep.subr.mxu0 0.0
        %1578 = vmatpush1.msra.mxu0 0.0
        %1579 = vmatprep.subr.mxu0 0.0
        %1580 = vmatpush1.msra.mxu0 0.0
        %1581 = vmatprep.subr.mxu0 0.0
        %1582 = vmatpush1.msra.mxu0 0.0
        %1583 = vmatprep.subr.mxu0 0.0
        %1584 = vmatpush1.msra.mxu0 0.0
        %1585 = vmatprep.subr.mxu0 0.0
        %1586 = vmatpush1.msra.mxu0 0.0
        %1587 = vmatprep.subr.mxu0 0.0
        %1588 = vmatpush1.msra.mxu0 0.0
        %1589 = vmatprep.subr.mxu0 0.0
        %1590 = vmatpush1.msra.mxu0 0.0
        %1591 = vmatprep.subr.mxu0 0.0
        %1592 = vmatpush1.msra.mxu0 0.0
        %1593 = vmatprep.subr.mxu0 0.0
        %1594 = vmatpush1.msra.mxu0 0.0
        %1595 = vmatprep.subr.mxu0 0.0
        %1596 = vmatpush1.msra.mxu0 0.0
        %1597 = vmatprep.subr.mxu0 0.0
        %1598 = vmatpush1.msra.mxu0 0.0
        %1599 = vmatprep.subr.mxu0 0.0
        %1600 = vmatpush1.msra.mxu0 0.0
        %1601 = vmatprep.subr.mxu0 0.0
        %1602 = vmatpush1.msra.mxu0 0.0
        %1603 = vmatprep.subr.mxu0 0.0
        %1604 = vmatpush1.msra.mxu0 0.0
        %1605 = vmatprep.subr.mxu0 0.0
        %1606 = vmatpush1.msra.mxu0 0.0
        %1607 = vmatprep.subr.mxu0 0.0
        %1608 = vmatpush1.msra.mxu0 0.0
        %1609 = vmatprep.subr.mxu0 0.0
        %1610 = vmatpush1.msra.mxu0 0.0
        %1611 = vmatprep.subr.mxu0 0.0
        %1612 = vmatpush1.msra.mxu0 0.0
        %1613 = vmatprep.subr.mxu0 0.0
        %1614 = vmatpush1.msra.mxu0 0.0
        %1615 = vmatprep.subr.mxu0 0.0
        %1616 = vmatpush1.msra.mxu0 0.0
        %1617 = vmatprep.subr.mxu0 0.0
        %1618 = vmatpush1.msra.mxu0 0.0
        %1619 = vmatprep.subr.mxu0 0.0
        %1620 = vmatpush1.msra.mxu0 0.0
        %1621 = vmatprep.subr.mxu0 0.0
        %1622 = vmatpush1.msra.mxu0 0.0
        %1623 = vmatprep.subr.mxu0 0.0
        %1624 = vmatpush1.msra.mxu0 0.0
        %1625 = vmatprep.subr.mxu0 0.0
        %1626 = vmatpush1.msra.mxu0 0.0
        %1627 = vmatprep.subr.mxu0 0.0
        %1628 = vmatpush1.msra.mxu0 0.0
        %1629 = vmatprep.subr.mxu0 0.0
        %1630 = vmatpush1.msra.mxu0 0.0
        %1631 = vmatprep.subr.mxu0 0.0
        %1632 = vmatpush1.msra.mxu0 0.0
        %1633 = vmatprep.subr.mxu0 0.0
        %1634 = vmatpush1.msra.mxu0 0.0
        %1635 = vmatprep.mubr.f32.mxu0 0.0
        %1636 = vmatmul.mubr.f32.gmra.mrb[0].mxu0 %v1566
        %v1637 = vpop.f32.mrb[0].mxu0
        %v1638 = vadd.f32 %v1558, %v1637
        %v1639 = vpop.f32.mrb[0].mxu0
        %1640 = vmatprep.mubr.f32.mxu0 0.0
        %1641 = vmatmul.mubr.f32.gmra.mrb[0].mxu0 %v1569
        %v1642 = vpop.f32.mrb[0].mxu0
        %v1643 = vadd.f32 %v1563, %v1642
        %v1644 = vpop.f32.mrb[0].mxu0
        %1645 = vdwg.mxu0
        %v1646 = vadd.f32 %v1286, %v1638
        %v1647 = vadd.f32 %v1287, %v1643
        %v1648 = vmul.f32 %v1646, %v466
        %v1649 = vmul.f32 %v1647, %v466
        %s1650 = scalar_lea.vmem %s4, 48
        %v1651 = vld [vmem:[%s1650] sm:$0xff]
        %v1652 = vld [vmem:[%s1650 + $0x8] sm:$0xff]
        %v1654 = vsel %vm570, %v1648, 0
        %v1657 = vsel %vm570, %v1649, 0
        %1659 = vmatprep.subr.mxu0 0.0
        %1660 = vmatpush1.msra.mxu0 %v1651
        %1661 = vmatprep.subr.mxu0 0.0
        %1662 = vmatpush1.msra.mxu0 %v1652
        %1663 = vmatprep.subr.mxu0 0.0
        %1664 = vmatpush1.msra.mxu0 0.0
        %1665 = vmatprep.subr.mxu0 0.0
        %1666 = vmatpush1.msra.mxu0 0.0
        %1667 = vmatprep.subr.mxu0 0.0
        %1668 = vmatpush1.msra.mxu0 0.0
        %1669 = vmatprep.subr.mxu0 0.0
        %1670 = vmatpush1.msra.mxu0 0.0
        %1671 = vmatprep.subr.mxu0 0.0
        %1672 = vmatpush1.msra.mxu0 0.0
        %1673 = vmatprep.subr.mxu0 0.0
        %1674 = vmatpush1.msra.mxu0 0.0
        %1675 = vmatprep.subr.mxu0 0.0
        %1676 = vmatpush1.msra.mxu0 0.0
        %1677 = vmatprep.subr.mxu0 0.0
        %1678 = vmatpush1.msra.mxu0 0.0
        %1679 = vmatprep.subr.mxu0 0.0
        %1680 = vmatpush1.msra.mxu0 0.0
        %1681 = vmatprep.subr.mxu0 0.0
        %1682 = vmatpush1.msra.mxu0 0.0
        %1683 = vmatprep.subr.mxu0 0.0
        %1684 = vmatpush1.msra.mxu0 0.0
        %1685 = vmatprep.subr.mxu0 0.0
        %1686 = vmatpush1.msra.mxu0 0.0
        %1687 = vmatprep.subr.mxu0 0.0
        %1688 = vmatpush1.msra.mxu0 0.0
        %1689 = vmatprep.subr.mxu0 0.0
        %1690 = vmatpush1.msra.mxu0 0.0
        %1691 = vmatprep.subr.mxu0 0.0
        %1692 = vmatpush1.msra.mxu0 0.0
        %1693 = vmatprep.subr.mxu0 0.0
        %1694 = vmatpush1.msra.mxu0 0.0
        %1695 = vmatprep.subr.mxu0 0.0
        %1696 = vmatpush1.msra.mxu0 0.0
        %1697 = vmatprep.subr.mxu0 0.0
        %1698 = vmatpush1.msra.mxu0 0.0
        %1699 = vmatprep.subr.mxu0 0.0
        %1700 = vmatpush1.msra.mxu0 0.0
        %1701 = vmatprep.subr.mxu0 0.0
        %1702 = vmatpush1.msra.mxu0 0.0
        %1703 = vmatprep.subr.mxu0 0.0
        %1704 = vmatpush1.msra.mxu0 0.0
        %1705 = vmatprep.subr.mxu0 0.0
        %1706 = vmatpush1.msra.mxu0 0.0
        %1707 = vmatprep.subr.mxu0 0.0
        %1708 = vmatpush1.msra.mxu0 0.0
        %1709 = vmatprep.subr.mxu0 0.0
        %1710 = vmatpush1.msra.mxu0 0.0
        %1711 = vmatprep.subr.mxu0 0.0
        %1712 = vmatpush1.msra.mxu0 0.0
        %1713 = vmatprep.subr.mxu0 0.0
        %1714 = vmatpush1.msra.mxu0 0.0
        %1715 = vmatprep.subr.mxu0 0.0
        %1716 = vmatpush1.msra.mxu0 0.0
        %1717 = vmatprep.subr.mxu0 0.0
        %1718 = vmatpush1.msra.mxu0 0.0
        %1719 = vmatprep.subr.mxu0 0.0
        %1720 = vmatpush1.msra.mxu0 0.0
        %1721 = vmatprep.subr.mxu0 0.0
        %1722 = vmatpush1.msra.mxu0 0.0
        %1723 = vmatprep.mubr.f32.mxu0 0.0
        %1724 = vmatmul.mubr.f32.gmra.mrb[0].mxu0 %v1654
        %v1725 = vpop.f32.mrb[0].mxu0
        %v1726 = vadd.f32 0.0, %v1725
        %v1727 = vpop.f32.mrb[0].mxu0
        %1728 = vmatprep.mubr.f32.mxu0 0.0
        %1729 = vmatmul.mubr.f32.gmra.mrb[0].mxu0 %v1657
        %v1730 = vpop.f32.mrb[0].mxu0
        %v1731 = vadd.f32 0.0, %v1730
        %v1732 = vpop.f32.mrb[0].mxu0
        %1733 = vdwg.mxu0
        %s1734 = scalar_lea.vmem %s5, 48
        %v1735 = vld [vmem:[%s1734] sm:$0xff]
        %v1736 = vld [vmem:[%s1734 + $0x8] sm:$0xff]
        %1737 = vmatprep.subr.mxu0 0.0
        %1738 = vmatpush1.msra.mxu0 %v1735
        %1739 = vmatprep.subr.mxu0 0.0
        %1740 = vmatpush1.msra.mxu0 %v1736
        %1741 = vmatprep.subr.mxu0 0.0
        %1742 = vmatpush1.msra.mxu0 0.0
        %1743 = vmatprep.subr.mxu0 0.0
        %1744 = vmatpush1.msra.mxu0 0.0
        %1745 = vmatprep.subr.mxu0 0.0
        %1746 = vmatpush1.msra.mxu0 0.0
        %1747 = vmatprep.subr.mxu0 0.0
        %1748 = vmatpush1.msra.mxu0 0.0
        %1749 = vmatprep.subr.mxu0 0.0
        %1750 = vmatpush1.msra.mxu0 0.0
        %1751 = vmatprep.subr.mxu0 0.0
        %1752 = vmatpush1.msra.mxu0 0.0
        %1753 = vmatprep.subr.mxu0 0.0
        %1754 = vmatpush1.msra.mxu0 0.0
        %1755 = vmatprep.subr.mxu0 0.0
        %1756 = vmatpush1.msra.mxu0 0.0
        %1757 = vmatprep.subr.mxu0 0.0
        %1758 = vmatpush1.msra.mxu0 0.0
        %1759 = vmatprep.subr.mxu0 0.0
        %1760 = vmatpush1.msra.mxu0 0.0
        %1761 = vmatprep.subr.mxu0 0.0
        %1762 = vmatpush1.msra.mxu0 0.0
        %1763 = vmatprep.subr.mxu0 0.0
        %1764 = vmatpush1.msra.mxu0 0.0
        %1765 = vmatprep.subr.mxu0 0.0
        %1766 = vmatpush1.msra.mxu0 0.0
        %1767 = vmatprep.subr.mxu0 0.0
        %1768 = vmatpush1.msra.mxu0 0.0
        %1769 = vmatprep.subr.mxu0 0.0
        %1770 = vmatpush1.msra.mxu0 0.0
        %1771 = vmatprep.subr.mxu0 0.0
        %1772 = vmatpush1.msra.mxu0 0.0
        %1773 = vmatprep.subr.mxu0 0.0
        %1774 = vmatpush1.msra.mxu0 0.0
        %1775 = vmatprep.subr.mxu0 0.0
        %1776 = vmatpush1.msra.mxu0 0.0
        %1777 = vmatprep.subr.mxu0 0.0
        %1778 = vmatpush1.msra.mxu0 0.0
        %1779 = vmatprep.subr.mxu0 0.0
        %1780 = vmatpush1.msra.mxu0 0.0
        %1781 = vmatprep.subr.mxu0 0.0
        %1782 = vmatpush1.msra.mxu0 0.0
        %1783 = vmatprep.subr.mxu0 0.0
        %1784 = vmatpush1.msra.mxu0 0.0
        %1785 = vmatprep.subr.mxu0 0.0
        %1786 = vmatpush1.msra.mxu0 0.0
        %1787 = vmatprep.subr.mxu0 0.0
        %1788 = vmatpush1.msra.mxu0 0.0
        %1789 = vmatprep.subr.mxu0 0.0
        %1790 = vmatpush1.msra.mxu0 0.0
        %1791 = vmatprep.subr.mxu0 0.0
        %1792 = vmatpush1.msra.mxu0 0.0
        %1793 = vmatprep.subr.mxu0 0.0
        %1794 = vmatpush1.msra.mxu0 0.0
        %1795 = vmatprep.subr.mxu0 0.0
        %1796 = vmatpush1.msra.mxu0 0.0
        %1797 = vmatprep.subr.mxu0 0.0
        %1798 = vmatpush1.msra.mxu0 0.0
        %1799 = vmatprep.subr.mxu0 0.0
        %1800 = vmatpush1.msra.mxu0 0.0
        %1801 = vmatprep.mubr.f32.mxu0 0.0
        %1802 = vmatmul.mubr.f32.gmra.mrb[0].mxu0 %v1654
        %v1803 = vpop.f32.mrb[0].mxu0
        %v1804 = vadd.f32 0.0, %v1803
        %v1805 = vpop.f32.mrb[0].mxu0
        %1806 = vmatprep.mubr.f32.mxu0 0.0
        %1807 = vmatmul.mubr.f32.gmra.mrb[0].mxu0 %v1657
        %v1808 = vpop.f32.mrb[0].mxu0
        %v1809 = vadd.f32 0.0, %v1808
        %v1810 = vpop.f32.mrb[0].mxu0
        %1811 = vdwg.mxu0
        %s1812 = scalar_lea.vmem %s6, 48
        %v1813 = vld [vmem:[%s1812] sm:$0xff]
        %v1814 = vld [vmem:[%s1812 + $0x8] sm:$0xff]
        %s1815 = scalar_lea.vmem %s7, 48
        %v1816 = vld [vmem:[%s1815] sm:$0xff]
        %v1817 = vld [vmem:[%s1815 + $0x8] sm:$0xff]
        %1819 = vset.pattern.permute.xlu0 0
        %1820 = vperm.xlu0 %1819, %v1816
        %v1821 = vpop.permute.xlu0 %1820
        %1824 = vset.pattern.permute.xlu0 0
        %1825 = vperm.xlu0 %1824, %v1817
        %v1826 = vpop.permute.xlu0 %1825
        %v1829 = vsel %vm743, %v1813, 0
        %v1832 = vsel %vm743, %v1814, 0
        %1834 = vmatprep.subr.mxu0 0.0
        %1835 = vmatpush1.msra.mxu0 %v1726
        %1836 = vmatprep.subr.mxu0 0.0
        %1837 = vmatpush1.msra.mxu0 %v1731
        %1838 = vmatprep.subr.mxu0 0.0
        %1839 = vmatpush1.msra.mxu0 %v1648
        %1840 = vmatprep.subr.mxu0 0.0
        %1841 = vmatpush1.msra.mxu0 %v1649
        %1842 = vmatprep.subr.mxu0 0.0
        %1843 = vmatpush1.msra.mxu0 %v1804
        %1844 = vmatprep.subr.mxu0 0.0
        %1845 = vmatpush1.msra.mxu0 %v1809
        %1846 = vmatprep.subr.mxu0 0.0
        %1847 = vmatpush1.msra.mxu0 0.0
        %1848 = vmatprep.subr.mxu0 0.0
        %1849 = vmatpush1.msra.mxu0 0.0
        %1850 = vmatprep.subr.mxu0 0.0
        %1851 = vmatpush1.msra.mxu0 0.0
        %1852 = vmatprep.subr.mxu0 0.0
        %1853 = vmatpush1.msra.mxu0 0.0
        %1854 = vmatprep.subr.mxu0 0.0
        %1855 = vmatpush1.msra.mxu0 0.0
        %1856 = vmatprep.subr.mxu0 0.0
        %1857 = vmatpush1.msra.mxu0 0.0
        %1858 = vmatprep.subr.mxu0 0.0
        %1859 = vmatpush1.msra.mxu0 0.0
        %1860 = vmatprep.subr.mxu0 0.0
        %1861 = vmatpush1.msra.mxu0 0.0
        %1862 = vmatprep.subr.mxu0 0.0
        %1863 = vmatpush1.msra.mxu0 0.0
        %1864 = vmatprep.subr.mxu0 0.0
        %1865 = vmatpush1.msra.mxu0 0.0
        %1866 = vmatprep.subr.mxu0 0.0
        %1867 = vmatpush1.msra.mxu0 0.0
        %1868 = vmatprep.subr.mxu0 0.0
        %1869 = vmatpush1.msra.mxu0 0.0
        %1870 = vmatprep.subr.mxu0 0.0
        %1871 = vmatpush1.msra.mxu0 0.0
        %1872 = vmatprep.subr.mxu0 0.0
        %1873 = vmatpush1.msra.mxu0 0.0
        %1874 = vmatprep.subr.mxu0 0.0
        %1875 = vmatpush1.msra.mxu0 0.0
        %1876 = vmatprep.subr.mxu0 0.0
        %1877 = vmatpush1.msra.mxu0 0.0
        %1878 = vmatprep.subr.mxu0 0.0
        %1879 = vmatpush1.msra.mxu0 0.0
        %1880 = vmatprep.subr.mxu0 0.0
        %1881 = vmatpush1.msra.mxu0 0.0
        %1882 = vmatprep.subr.mxu0 0.0
        %1883 = vmatpush1.msra.mxu0 0.0
        %1884 = vmatprep.subr.mxu0 0.0
        %1885 = vmatpush1.msra.mxu0 0.0
        %1886 = vmatprep.subr.mxu0 0.0
        %1887 = vmatpush1.msra.mxu0 0.0
        %1888 = vmatprep.subr.mxu0 0.0
        %1889 = vmatpush1.msra.mxu0 0.0
        %1890 = vmatprep.subr.mxu0 0.0
        %1891 = vmatpush1.msra.mxu0 0.0
        %1892 = vmatprep.subr.mxu0 0.0
        %1893 = vmatpush1.msra.mxu0 0.0
        %1894 = vmatprep.subr.mxu0 0.0
        %1895 = vmatpush1.msra.mxu0 0.0
        %1896 = vmatprep.subr.mxu0 0.0
        %1897 = vmatpush1.msra.mxu0 0.0
        %1898 = vmatprep.mubr.f32.mxu0 0.0
        %1899 = vmatmul.mubr.f32.gmra.mrb[0].mxu0 %v1829
        %v1900 = vpop.f32.mrb[0].mxu0
        %v1901 = vadd.f32 %v1821, %v1900
        %v1902 = vpop.f32.mrb[0].mxu0
        %1903 = vmatprep.mubr.f32.mxu0 0.0
        %1904 = vmatmul.mubr.f32.gmra.mrb[0].mxu0 %v1832
        %v1905 = vpop.f32.mrb[0].mxu0
        %v1906 = vadd.f32 %v1826, %v1905
        %v1907 = vpop.f32.mrb[0].mxu0
        %1908 = vdwg.mxu0
        %v1909 = vmax.f32 %v1901, 0.0
        %v1910 = vmax.f32 %v1906, 0.0
        %s1911 = scalar_lea.vmem %s8, 48
        %v1912 = vld [vmem:[%s1911] sm:$0xff]
        %v1913 = vld [vmem:[%s1911 + $0x8] sm:$0xff]
        %s1914 = scalar_lea.vmem %s9, 48
        %v1915 = vld [vmem:[%s1914] sm:$0xff]
        %v1916 = vld [vmem:[%s1914 + $0x8] sm:$0xff]
        %1918 = vset.pattern.permute.xlu0 0
        %1919 = vperm.xlu0 %1918, %v1915
        %v1920 = vpop.permute.xlu0 %1919
        %1923 = vset.pattern.permute.xlu0 0
        %1924 = vperm.xlu0 %1923, %v1916
        %v1925 = vpop.permute.xlu0 %1924
        %v1928 = vsel %vm570, %v1912, 0
        %v1931 = vsel %vm570, %v1913, 0
        %1933 = vmatprep.subr.mxu0 0.0
        %1934 = vmatpush1.msra.mxu0 %v1909
        %1935 = vmatprep.subr.mxu0 0.0
        %1936 = vmatpush1.msra.mxu0 %v1910
        %1937 = vmatprep.subr.mxu0 0.0
        %1938 = vmatpush1.msra.mxu0 0.0
        %1939 = vmatprep.subr.mxu0 0.0
        %1940 = vmatpush1.msra.mxu0 0.0
        %1941 = vmatprep.subr.mxu0 0.0
        %1942 = vmatpush1.msra.mxu0 0.0
        %1943 = vmatprep.subr.mxu0 0.0
        %1944 = vmatpush1.msra.mxu0 0.0
        %1945 = vmatprep.subr.mxu0 0.0
        %1946 = vmatpush1.msra.mxu0 0.0
        %1947 = vmatprep.subr.mxu0 0.0
        %1948 = vmatpush1.msra.mxu0 0.0
        %1949 = vmatprep.subr.mxu0 0.0
        %1950 = vmatpush1.msra.mxu0 0.0
        %1951 = vmatprep.subr.mxu0 0.0
        %1952 = vmatpush1.msra.mxu0 0.0
        %1953 = vmatprep.subr.mxu0 0.0
        %1954 = vmatpush1.msra.mxu0 0.0
        %1955 = vmatprep.subr.mxu0 0.0
        %1956 = vmatpush1.msra.mxu0 0.0
        %1957 = vmatprep.subr.mxu0 0.0
        %1958 = vmatpush1.msra.mxu0 0.0
        %1959 = vmatprep.subr.mxu0 0.0
        %1960 = vmatpush1.msra.mxu0 0.0
        %1961 = vmatprep.subr.mxu0 0.0
        %1962 = vmatpush1.msra.mxu0 0.0
        %1963 = vmatprep.subr.mxu0 0.0
        %1964 = vmatpush1.msra.mxu0 0.0
        %1965 = vmatprep.subr.mxu0 0.0
        %1966 = vmatpush1.msra.mxu0 0.0
        %1967 = vmatprep.subr.mxu0 0.0
        %1968 = vmatpush1.msra.mxu0 0.0
        %1969 = vmatprep.subr.mxu0 0.0
        %1970 = vmatpush1.msra.mxu0 0.0
        %1971 = vmatprep.subr.mxu0 0.0
        %1972 = vmatpush1.msra.mxu0 0.0
        %1973 = vmatprep.subr.mxu0 0.0
        %1974 = vmatpush1.msra.mxu0 0.0
        %1975 = vmatprep.subr.mxu0 0.0
        %1976 = vmatpush1.msra.mxu0 0.0
        %1977 = vmatprep.subr.mxu0 0.0
        %1978 = vmatpush1.msra.mxu0 0.0
        %1979 = vmatprep.subr.mxu0 0.0
        %1980 = vmatpush1.msra.mxu0 0.0
        %1981 = vmatprep.subr.mxu0 0.0
        %1982 = vmatpush1.msra.mxu0 0.0
        %1983 = vmatprep.subr.mxu0 0.0
        %1984 = vmatpush1.msra.mxu0 0.0
        %1985 = vmatprep.subr.mxu0 0.0
        %1986 = vmatpush1.msra.mxu0 0.0
        %1987 = vmatprep.subr.mxu0 0.0
        %1988 = vmatpush1.msra.mxu0 0.0
        %1989 = vmatprep.subr.mxu0 0.0
        %1990 = vmatpush1.msra.mxu0 0.0
        %1991 = vmatprep.subr.mxu0 0.0
        %1992 = vmatpush1.msra.mxu0 0.0
        %1993 = vmatprep.subr.mxu0 0.0
        %1994 = vmatpush1.msra.mxu0 0.0
        %1995 = vmatprep.subr.mxu0 0.0
        %1996 = vmatpush1.msra.mxu0 0.0
        %1997 = vmatprep.mubr.f32.mxu0 0.0
        %1998 = vmatmul.mubr.f32.gmra.mrb[0].mxu0 %v1928
        %v1999 = vpop.f32.mrb[0].mxu0
        %v2000 = vadd.f32 %v1920, %v1999
        %v2001 = vpop.f32.mrb[0].mxu0
        %2002 = vmatprep.mubr.f32.mxu0 0.0
        %2003 = vmatmul.mubr.f32.gmra.mrb[0].mxu0 %v1931
        %v2004 = vpop.f32.mrb[0].mxu0
        %v2005 = vadd.f32 %v1925, %v2004
        %v2006 = vpop.f32.mrb[0].mxu0
        %2007 = vdwg.mxu0
        %v2008 = vadd.f32 %v1648, %v2000
        %v2009 = vadd.f32 %v1649, %v2005
        %v2010 = vmul.f32 %v2008, %v466
        %v2011 = vmul.f32 %v2009, %v466
        %v2012 = vld [vmem:[%s10] sm:$0xff]
        %v2013 = vld [vmem:[%s11] sm:$0xff]
        %2015 = vset.pattern.permute.xlu0 0
        %2016 = vperm.xlu0 %2015, %v2013
        %v2017 = vpop.permute.xlu0 %2016
        %v2020 = vsel %vm570, %v2012, 0
        %2022 = vmatprep.subr.mxu0 0.0
        %2023 = vmatpush1.msra.mxu0 %v2010
        %2024 = vmatprep.subr.mxu0 0.0
        %2025 = vmatpush1.msra.mxu0 %v2011
        %2026 = vmatprep.subr.mxu0 0.0
        %2027 = vmatpush1.msra.mxu0 0.0
        %2028 = vmatprep.subr.mxu0 0.0
        %2029 = vmatpush1.msra.mxu0 0.0
        %2030 = vmatprep.subr.mxu0 0.0
        %2031 = vmatpush1.msra.mxu0 0.0
        %2032 = vmatprep.subr.mxu0 0.0
        %2033 = vmatpush1.msra.mxu0 0.0
        %2034 = vmatprep.subr.mxu0 0.0
        %2035 = vmatpush1.msra.mxu0 0.0
        %2036 = vmatprep.subr.mxu0 0.0
        %2037 = vmatpush1.msra.mxu0 0.0
        %2038 = vmatprep.subr.mxu0 0.0
        %2039 = vmatpush1.msra.mxu0 0.0
        %2040 = vmatprep.subr.mxu0 0.0
        %2041 = vmatpush1.msra.mxu0 0.0
        %2042 = vmatprep.subr.mxu0 0.0
        %2043 = vmatpush1.msra.mxu0 0.0
        %2044 = vmatprep.subr.mxu0 0.0
        %2045 = vmatpush1.msra.mxu0 0.0
        %2046 = vmatprep.subr.mxu0 0.0
        %2047 = vmatpush1.msra.mxu0 0.0
        %2048 = vmatprep.subr.mxu0 0.0
        %2049 = vmatpush1.msra.mxu0 0.0
        %2050 = vmatprep.subr.mxu0 0.0
        %2051 = vmatpush1.msra.mxu0 0.0
        %2052 = vmatprep.subr.mxu0 0.0
        %2053 = vmatpush1.msra.mxu0 0.0
        %2054 = vmatprep.subr.mxu0 0.0
        %2055 = vmatpush1.msra.mxu0 0.0
        %2056 = vmatprep.subr.mxu0 0.0
        %2057 = vmatpush1.msra.mxu0 0.0
        %2058 = vmatprep.subr.mxu0 0.0
        %2059 = vmatpush1.msra.mxu0 0.0
        %2060 = vmatprep.subr.mxu0 0.0
        %2061 = vmatpush1.msra.mxu0 0.0
        %2062 = vmatprep.subr.mxu0 0.0
        %2063 = vmatpush1.msra.mxu0 0.0
        %2064 = vmatprep.subr.mxu0 0.0
        %2065 = vmatpush1.msra.mxu0 0.0
        %2066 = vmatprep.subr.mxu0 0.0
        %2067 = vmatpush1.msra.mxu0 0.0
        %2068 = vmatprep.subr.mxu0 0.0
        %2069 = vmatpush1.msra.mxu0 0.0
        %2070 = vmatprep.subr.mxu0 0.0
        %2071 = vmatpush1.msra.mxu0 0.0
        %2072 = vmatprep.subr.mxu0 0.0
        %2073 = vmatpush1.msra.mxu0 0.0
        %2074 = vmatprep.subr.mxu0 0.0
        %2075 = vmatpush1.msra.mxu0 0.0
        %2076 = vmatprep.subr.mxu0 0.0
        %2077 = vmatpush1.msra.mxu0 0.0
        %2078 = vmatprep.subr.mxu0 0.0
        %2079 = vmatpush1.msra.mxu0 0.0
        %2080 = vmatprep.subr.mxu0 0.0
        %2081 = vmatpush1.msra.mxu0 0.0
        %2082 = vmatprep.subr.mxu0 0.0
        %2083 = vmatpush1.msra.mxu0 0.0
        %2084 = vmatprep.subr.mxu0 0.0
        %2085 = vmatpush1.msra.mxu0 0.0
        %2086 = vmatprep.mubr.f32.mxu0 0.0
        %2087 = vmatmul.mubr.f32.gmra.mrb[0].mxu0 %v2020
        %v2088 = vpop.f32.mrb[0].mxu0
        %v2089 = vadd.f32 %v2017, %v2088
        %v2090 = vpop.f32.mrb[0].mxu0
        %2091 = vdwg.mxu0
        %v2092 = vmul.f32 %v2089, %v466
        %2093 = vst.msk [vmem:[%s455] sm:$0xff] %vm570, %v2092
        %s2094 = sand.u32 %s300, 1
        %s2095 = scalar_lea.sflag [#allocation4], %s2094
        %s2096 = sand.u32 %s300, 1
        %s2097 = smul.addr %s2096, 8
        %s2098 = scalar_lea.vmem [#allocation7], %s2097
        // Predicated region
        $region77: #{tpu_custom_call.1} parent=67 // pred_check
          %p2099 = pneg %p310
        $region78: #{tpu_custom_call.1} parent=67 // pred_check_branch
          %2101 = sbr.rel (%p2099) target = $region80
        $region79: #{tpu_custom_call.1} parent=67 // pred_region
          %s2103 = ssub.s32 128, 128
          %2104 = vsyncadd %s2095, %s2103
          %s2105 = smul.addr %s30, 128
          %s2106 = scalar_lea.hbm %s12, %s2105
          %s2108 = sshll.u32 %s2098, 4
          %s2109 = int_to_ptr.vmem [resolvable:$true] %s2108
          %2111 = dma.vmem_to_hbm [thread:$0]  %s2109, 128, %s2106, %s2095
        $region80: #{tpu_custom_call.1} parent=67 // pred_fallthru
          _
      $region68: #{tpu_custom_call.1} parent=5 // pred_fallthru
        _
      %p2112 = scmp.le.s32.totalorder 2, %s25
      // Predicated region
      $region81: #{tpu_custom_call.1} parent=5 // pred_check
        %p2113 = pneg %p2112
      $region82: #{tpu_custom_call.1} parent=5 // pred_check_branch
        %2115 = sbr.rel (%p2113) target = $region84
      $region83: #{tpu_custom_call.1} parent=5 // pred_region
        %s2116 = ssub.s32 %s25, 2
        // Predicated region
        $region85: #{tpu_custom_call.1} parent=83 // pred_check
          %p2117 = pneg %p316
        $region86: #{tpu_custom_call.1} parent=83 // pred_check_branch
          %2119 = sbr.rel (%p2117) target = $region88
        $region87: #{tpu_custom_call.1} parent=83 // pred_region
          %s2120 = sand.u32 %s301, 1
          %s2121 = scalar_lea.sflag [#allocation4], %s2120
          %s2122 = sand.u32 %s301, 1
          %s2123 = smul.addr %s2122, 8
          %s2124 = scalar_lea.vmem [#allocation7], %s2123
          %2125 = dma.done %s2121, 128
        $region88: #{tpu_custom_call.1} parent=83 // pred_fallthru
          _
      $region84: #{tpu_custom_call.1} parent=5 // pred_fallthru
        _
    $region6: #{tpu_custom_call.1} parent=1 // loop_footer
      %s29 = sadd.s32 1, %s25
    $region7: #{tpu_custom_call.1} parent=1 // loop_footer_branch
      %24 = sbr.rel target = $region3
    $region8: #{tpu_custom_call.1} parent=1 // loop_exit
      _
    %2126 = vsyncpa [#allocation3], 1
    %s2127 = scalar_lea.sflag [#allocation3], 1
    %2128 = vsyncpa %s2127, 1
    %2129 = vsyncpa [#allocation6], 1
    %2130 = vsyncpa [#allocation4], 1
    %s2131 = scalar_lea.sflag [#allocation4], 1
    %2132 = vsyncpa %s2131, 1

</llo_original>
